<compile_context>
chip_gen: v5e
topology: v5e:2x2
jax: 0.10.0
libtpu: 0.0.40
codegen_flags: <defaults>
</compile_context>

<pallas_src>
import functools
import math

import jax
import jax.numpy as jnp
from jax import lax
from jax.experimental import pallas as pl
from jax.experimental.pallas import tpu as pltpu

# ---------------- GPTConfig ----------------
BLOCK_SIZE = 2
VOCAB_SIZE = 97
VOCAB_PAD = 128          # vocab padded to a full 128-lane width (rows 97.. are zero)
N_LAYER = 2
N_HEAD = 4
N_EMBD = 128
FFN = 4 * N_EMBD
LN_EPS = 1e-5


# ---------------- shared math helpers (usable inside kernels) ----------------
def _layernorm(x, g, b):
    mu = jnp.mean(x, axis=-1, keepdims=True)
    var = jnp.mean((x - mu) ** 2, axis=-1, keepdims=True)
    return (x - mu) * lax.rsqrt(var + LN_EPS) * g + b


def _gelu_tanh(x):
    # matches torch.nn.GELU(approximate='tanh')
    return 0.5 * x * (1.0 + jnp.tanh(0.7978845608028654 * (x + 0.044715 * x * x * x)))


# ---------------- fused single-call Pallas kernel ----------------
def _gpt_fwd_kernel(idx_ref, pos_ref, fp_ref, wa_ref, wb_ref, o_ref, *,
                    n_layer, n_head, batch, seq):
    """Entire GPT forward on one (B*T, C) activation slab (single invocation).

    idx_ref : (N,1) i32 token ids
    pos_ref : (N,C) f32 pre-tiled positional embeddings
    fp_ref  : (R,4C) f32 slab -- per layer rows [ln1w, ln1b, bqkv, bpr, ln2w,
              ln2b, bfc, bp2], then lnf_w, lnf_b
    wa_ref  : (C, *) bf16 slab -- per layer lanes [wqkv|wproj|wfc], then
              [wte | wte_T | seg]
    wb_ref  : (*, C) bf16 slab -- per layer rows wproj2 (4C,C), then seg_t
    o_ref   : (N, VOCAB_PAD) f32 padded logits
    """
    C = N_EMBD
    FF = 4 * C
    N = batch * seq
    hd = C // n_head
    scale = 1.0 / math.sqrt(hd)

    # static slab offsets
    stride = 8 * C                       # per-layer lane stride in slab A
    off_wte = n_layer * stride
    off_wte_t = off_wte + C
    off_seg = off_wte_t + VOCAB_PAD
    off_seg_t = n_layer * FF             # row offset of seg_t in slab B

    wte = wa_ref[:, off_wte:off_wte + C]                 # (Vpad, C) bf16 (Vpad == C)
    wte_t = wa_ref[:, off_wte_t:off_wte_t + VOCAB_PAD]   # (C, Vpad) bf16
    seg = wa_ref[:, off_seg:off_seg + n_head]            # (C, H)  bf16
    seg_t = wb_ref[off_seg_t:off_seg_t + n_head, :]      # (H, C)  bf16

    # ---- fused embedding lookup: one_hot(idx) @ wte + pre-tiled positional rows ----
    onehot = (idx_ref[...] ==
              lax.broadcasted_iota(jnp.int32, (N, VOCAB_PAD), 1)).astype(jnp.bfloat16)
    x = jnp.dot(onehot, wte, preferred_element_type=jnp.float32) + pos_ref[...]

    # Rows are laid out (b, t).  A row attends to the previous row iff t > 0
    # (all-False when seq == 1, which also fixes the T=1 edge case).
    row_t = lax.broadcasted_iota(jnp.int32, (N, 1), 0) % seq
    has_prev = row_t > 0

    for l in range(n_layer):
        prow = 8 * l
        ln1w = fp_ref[prow + 0:prow + 1, 0:C]
        ln1b = fp_ref[prow + 1:prow + 2, 0:C]
        bqkv = fp_ref[prow + 2:prow + 3, 0:3 * C]
        bpr = fp_ref[prow + 3:prow + 4, 0:C]
        ln2w = fp_ref[prow + 4:prow + 5, 0:C]
        ln2b = fp_ref[prow + 5:prow + 6, 0:C]
        bfc = fp_ref[prow + 6:prow + 7, 0:FF]
        bp2 = fp_ref[prow + 7:prow + 8, 0:C]

        base = l * stride
        wqkv = wa_ref[:, base:base + 3 * C]
        wpr = wa_ref[:, base + 3 * C:base + 4 * C]
        wfc = wa_ref[:, base + 4 * C:base + 8 * C]
        wp2 = wb_ref[l * FF:(l + 1) * FF, :]

        # ---- causal self-attention (head-vectorized, block_size<=2 specialisation) ----
        # TODO(synk): general T > 2 would need a full (T,T) causal score tile per head.
        h = _layernorm(x, ln1w, ln1b)
        qkv = jnp.dot(h.astype(jnp.bfloat16), wqkv,
                      preferred_element_type=jnp.float32) + bqkv          # (N, 3C)
        q, k, v = qkv[:, :C], qkv[:, C:2 * C], qkv[:, 2 * C:]

        # previous-row (t-1) keys/values via XLU sublane rotate; the wrap rows
        # (t == 0) are fully gated out by p_prev == 0 below.
        k_prev = pltpu.roll(k, shift=1, axis=0)
        v_prev = pltpu.roll(v, shift=1, axis=0)

        # per-head scores via segment-sum matmuls (bf16 operands, f32 acc) -> (N, H)
        s_self = jnp.dot((q * k).astype(jnp.bfloat16), seg,
                         preferred_element_type=jnp.float32) * scale
        s_prev = jnp.dot((q * k_prev).astype(jnp.bfloat16), seg,
                         preferred_element_type=jnp.float32) * scale
        m = jnp.maximum(s_self, s_prev)
        e_self = jnp.exp(s_self - m)
        e_prev = jnp.exp(s_prev - m)
        inv = pl.reciprocal(e_self + e_prev, approx=True)
        p_self = jnp.where(has_prev, e_self * inv, 1.0)   # t==0: softmax over self only
        p_prev = jnp.where(has_prev, e_prev * inv, 0.0)

        # broadcast per-head weights back over each head's lanes, combine values
        y = (jnp.dot(p_self.astype(jnp.bfloat16), seg_t,
                     preferred_element_type=jnp.float32) * v +
             jnp.dot(p_prev.astype(jnp.bfloat16), seg_t,
                     preferred_element_type=jnp.float32) * v_prev)

        x = x + jnp.dot(y.astype(jnp.bfloat16), wpr,
                        preferred_element_type=jnp.float32) + bpr

        # ---- MLP ----
        h2 = _layernorm(x, ln2w, ln2b)
        ff = _gelu_tanh(jnp.dot(h2.astype(jnp.bfloat16), wfc,
                                preferred_element_type=jnp.float32) + bfc)
        x = x + jnp.dot(ff.astype(jnp.bfloat16), wp2,
                        preferred_element_type=jnp.float32) + bp2

    # ---- ln_f + tied lm_head on the pre-transposed weight (lane-dense store) ----
    lnf_row = 8 * n_layer
    hf = _layernorm(x, fp_ref[lnf_row:lnf_row + 1, 0:C],
                    fp_ref[lnf_row + 1:lnf_row + 2, 0:C]).astype(jnp.bfloat16)
    o_ref[...] = jnp.dot(hf, wte_t, preferred_element_type=jnp.float32)


# ---------------- parameter packing (layout plumbing, done outside the kernel) ----------------
def pack_params(params):
    """Pack all weights into 3 contiguous slabs -> 3 large DMAs instead of ~27."""
    C = N_EMBD
    assert VOCAB_PAD == C, "slab-A packing assumes vocab_pad == n_embd == 128"
    hd = C // N_HEAD

    # f32 small-param slab: one vector per row, rows padded to width 4C
    def row(vec):
        v = jnp.asarray(vec, jnp.float32).reshape(-1)
        return jnp.pad(v, (0, 4 * C - v.shape[0]))

    rows = []
    for lp in params["blocks"]:
        (ln1w, ln1b, _wqkv, bqkv, _wpr, bpr,
         ln2w, ln2b, _wfc, bfc, _wp2, bp2) = lp
        for v in (ln1w, ln1b, bqkv, bpr, ln2w, ln2b, bfc, bp2):
            rows.append(row(v))
    rows.append(row(params["lnf_w"]))
    rows.append(row(params["lnf_b"]))
    fparams = jnp.stack(rows, axis=0)
    pad_r = (-fparams.shape[0]) % 8
    if pad_r:
        fparams = jnp.pad(fparams, ((0, pad_r), (0, 0)))

    # lane->head / head->lane segment matrices (exact in bf16)
    seg = (jnp.arange(C)[:, None] // hd ==
           jnp.arange(N_HEAD)[None, :]).astype(jnp.bfloat16)            # (C, H)
    seg_t = (jnp.arange(C)[None, :] // hd ==
             jnp.arange(N_HEAD)[:, None]).astype(jnp.bfloat16)          # (H, C)

    # bf16 slab A: all 128-row matrices concatenated along lanes
    wte = params["wte"]                                                 # (Vpad, C) bf16
    mats_a = []
    for lp in params["blocks"]:
        mats_a += [lp[2], lp[4], lp[8]]        # wqkv (C,3C), wproj (C,C), wfc (C,4C)
    mats_a += [wte, wte.T, seg]                # wte, pre-transposed lm head, seg
    wslab_a = jnp.concatenate(mats_a, axis=1)
    pad_l = (-wslab_a.shape[1]) % 128
    if pad_l:
        wslab_a = jnp.pad(wslab_a, ((0, 0), (0, pad_l)))

    # bf16 slab B: (4C, C) MLP c_proj weights stacked along rows, then seg_t
    mats_b = [lp[10] for lp in params["blocks"]] + [seg_t]
    wslab_b = jnp.concatenate(mats_b, axis=0)
    pad_b = (-wslab_b.shape[0]) % 16
    if pad_b:
        wslab_b = jnp.pad(wslab_b, ((0, pad_b), (0, 0)))

    return fparams, wslab_a, wslab_b


# ---------------- full GPT forward (one pallas_call) ----------------
def gpt_forward(params, idx, targets=None):
    B, T = idx.shape
    assert 1 <= T <= BLOCK_SIZE
    # TODO(synk): grid=() runs on one TensorCore (correct for v5e/v6e); on v7x a
    #             leading "parallel" batch grid axis of size 2 would use both TCs.
    N = B * T
    idx2d = idx.reshape(N, 1).astype(jnp.int32)
    pos_tiled = jnp.tile(params["wpe"][:T].astype(jnp.float32), (B, 1))   # (N, C)
    fparams, wslab_a, wslab_b = pack_params(params)

    logits_pad = pl.pallas_call(
        functools.partial(_gpt_fwd_kernel, n_layer=N_LAYER, n_head=N_HEAD,
                          batch=B, seq=T),
        out_shape=jax.ShapeDtypeStruct((N, VOCAB_PAD), jnp.float32),
        compiler_params=pltpu.CompilerParams(vmem_limit_bytes=32 * 1024 * 1024),
    )(idx2d, pos_tiled, fparams, wslab_a, wslab_b)

    logits = logits_pad.reshape(B, T, VOCAB_PAD)[:, :, :VOCAB_SIZE]

    loss = None
    accuracy = None
    if targets is not None:
        # TODO(synk): loss/accuracy kept in plain JAX (cheap scalar glue).
        logp = jax.nn.log_softmax(logits, axis=-1)
        loss = -jnp.mean(jnp.take_along_axis(logp, targets[..., None], axis=-1))
        accuracy = jnp.mean(
            (jnp.argmax(logits, axis=-1)[:, 1] == targets[:, 1]).astype(jnp.float32))
    return logits, loss, accuracy


# ---------------- deterministic parameter init ----------------
def init_params(key):
    std = 0.02
    proj_std = 0.02 * (2 * N_LAYER) ** -0.5   # NANOGPT_SCALE_INIT projections
    keys = jax.random.split(key, 2 + 4 * N_LAYER)
    it = iter(keys)
    wte_rows = std * jax.random.normal(next(it), (VOCAB_SIZE, N_EMBD), jnp.float32)
    wte = jnp.zeros((VOCAB_PAD, N_EMBD), jnp.float32).at[:VOCAB_SIZE].set(wte_rows)
    wte = wte.astype(jnp.bfloat16)            # tied embedding / lm_head weight (bf16)
    wpe = std * jax.random.normal(next(it), (BLOCK_SIZE, N_EMBD), jnp.float32)
    blocks = []
    for _ in range(N_LAYER):
        wqkv = (std * jax.random.normal(next(it), (N_EMBD, 3 * N_EMBD),
                                        jnp.float32)).astype(jnp.bfloat16)
        wproj = (proj_std * jax.random.normal(next(it), (N_EMBD, N_EMBD),
                                              jnp.float32)).astype(jnp.bfloat16)
        wfc = (std * jax.random.normal(next(it), (N_EMBD, FFN),
                                       jnp.float32)).astype(jnp.bfloat16)
        wproj2 = (proj_std * jax.random.normal(next(it), (FFN, N_EMBD),
                                               jnp.float32)).astype(jnp.bfloat16)
        blocks.append((
            jnp.ones((1, N_EMBD), jnp.float32), jnp.zeros((1, N_EMBD), jnp.float32),  # ln1
            wqkv, jnp.zeros((1, 3 * N_EMBD), jnp.float32),                            # c_attn
            wproj, jnp.zeros((1, N_EMBD), jnp.float32),                               # attn c_proj
            jnp.ones((1, N_EMBD), jnp.float32), jnp.zeros((1, N_EMBD), jnp.float32),  # ln2
            wfc, jnp.zeros((1, FFN), jnp.float32),                                    # c_fc
            wproj2, jnp.zeros((1, N_EMBD), jnp.float32),                              # mlp c_proj
        ))
    return dict(wte=wte, wpe=wpe, blocks=blocks,
                lnf_w=jnp.ones((1, N_EMBD), jnp.float32),
                lnf_b=jnp.zeros((1, N_EMBD), jnp.float32))


# ---------------- pure-JAX reference (for correctness check) ----------------
def reference_forward(params, idx):
    B, T = idx.shape
    wte = params["wte"].astype(jnp.float32)               # (VOCAB_PAD, C)
    x = wte[idx] + params["wpe"][None, :T, :]
    hd = N_EMBD // N_HEAD
    for lp in params["blocks"]:
        (ln1w, ln1b, wqkv, bqkv, wpr, bpr, ln2w, ln2b, wfc, bfc, wp2, bp2) = lp
        h = _layernorm(x, ln1w, ln1b)
        qkv = h @ wqkv.astype(jnp.float32) + bqkv
        q, k, v = jnp.split(qkv, 3, axis=-1)
        q = q.reshape(B, T, N_HEAD, hd).transpose(0, 2, 1, 3)
        k = k.reshape(B, T, N_HEAD, hd).transpose(0, 2, 1, 3)
        v = v.reshape(B, T, N_HEAD, hd).transpose(0, 2, 1, 3)
        s = jnp.einsum("bhqd,bhkd->bhqk", q, k) / math.sqrt(hd)
        mask = jnp.tril(jnp.ones((T, T), bool))
        s = jnp.where(mask, s, -1e30)
        p = jax.nn.softmax(s, axis=-1)
        y = jnp.einsum("bhqk,bhkd->bhqd", p, v).transpose(0, 2, 1, 3).reshape(B, T, N_EMBD)
        x = x + y @ wpr.astype(jnp.float32) + bpr
        h2 = _layernorm(x, ln2w, ln2b)
        ff = _gelu_tanh(h2 @ wfc.astype(jnp.float32) + bfc)
        x = x + ff @ wp2.astype(jnp.float32) + bp2
    h = _layernorm(x, params["lnf_w"], params["lnf_b"])
    return (h @ wte.T)[:, :, :VOCAB_SIZE]


if __name__ == "__main__":
    key = jax.random.PRNGKey(0)
    pkey, dkey, tkey = jax.random.split(key, 3)
    params = init_params(pkey)

    B = 4
    idx = jax.random.randint(dkey, (B, BLOCK_SIZE), 0, VOCAB_SIZE)
    targets = jax.random.randint(tkey, (B, BLOCK_SIZE), 0, VOCAB_SIZE)

    logits, loss, acc = gpt_forward(params, idx, targets)
    jax.block_until_ready(logits)
    jax.block_until_ready(loss)
    jax.block_until_ready(acc)

    ref = reference_forward(params, idx)
    assert logits.shape == (B, BLOCK_SIZE, VOCAB_SIZE)
    assert bool(jnp.all(jnp.isfinite(logits)))
    assert bool(jnp.allclose(logits, ref, atol=2e-2, rtol=2e-2)), "mismatch vs reference"

    print("KERNEL_OK")
</pallas_src>

<mosaic_0001>
module attributes {stable_mosaic.version = 11 : i64} {
  func.func @_gpt_fwd_kernel(%arg0: memref<8x1xi32, #tpu.memory_space<vmem>>, %arg1: memref<8x128xf32, #tpu.memory_space<vmem>>, %arg2: memref<24x512xf32, #tpu.memory_space<vmem>>, %arg3: memref<128x2432xbf16, #tpu.memory_space<vmem>>, %arg4: memref<1040x128xbf16, #tpu.memory_space<vmem>>, %arg5: memref<8x128xf32, #tpu.memory_space<vmem>>) attributes {dimension_semantics = [], scalar_prefetch = 0 : i64, scratch_operands = 0 : i64, tpu.core_type = #tpu.core_type<tc>} {
    %c0 = arith.constant 0 : index
    %c2048 = arith.constant 2048 : index
    %0 = vector.load %arg3[%c0, %c2048] : memref<128x2432xbf16, #tpu.memory_space<vmem>>, vector<128x128xbf16>
    %c0_0 = arith.constant 0 : index
    %c2176 = arith.constant 2176 : index
    %1 = vector.load %arg3[%c0_0, %c2176] : memref<128x2432xbf16, #tpu.memory_space<vmem>>, vector<128x128xbf16>
    %c0_1 = arith.constant 0 : index
    %c2304 = arith.constant 2304 : index
    %2 = vector.load %arg3[%c0_1, %c2304] : memref<128x2432xbf16, #tpu.memory_space<vmem>>, vector<128x4xbf16>
    %c1024 = arith.constant 1024 : index
    %c0_2 = arith.constant 0 : index
    %3 = vector.load %arg4[%c1024, %c0_2] : memref<1040x128xbf16, #tpu.memory_space<vmem>>, vector<4x128xbf16>
    %c0_3 = arith.constant 0 : index
    %c0_4 = arith.constant 0 : index
    %4 = vector.load %arg0[%c0_3, %c0_4] : memref<8x1xi32, #tpu.memory_space<vmem>>, vector<8x1xi32>
    %5 = tpu.iota {dimensions = array<i32: 1>} : vector<8x128xi32>
    %6 = vector.broadcast %4 : vector<8x1xi32> to vector<8x128xi32>
    %7 = arith.cmpi eq, %6, %5 : vector<8x128xi32>
    %8 = arith.extui %7 : vector<8x128xi1> to vector<8x128xi32>
    %9 = arith.sitofp %8 : vector<8x128xi32> to vector<8x128xf32>
    %10 = arith.truncf %9 : vector<8x128xf32> to vector<8x128xbf16>
    %cst = arith.constant dense<0.000000e+00> : vector<8x128xf32>
    %11 = tpu.matmul %10, %0, %cst {dimension_numbers = #tpu.dot_dimension_numbers<[1], [0], [0], [1], [0, 0, 1, 1], [], []>} : vector<8x128xbf16>, vector<128x128xbf16>, vector<8x128xf32> -> vector<8x128xf32>
    %c0_5 = arith.constant 0 : index
    %c0_6 = arith.constant 0 : index
    %12 = vector.load %arg1[%c0_5, %c0_6] : memref<8x128xf32, #tpu.memory_space<vmem>>, vector<8x128xf32>
    %13 = arith.addf %11, %12 : vector<8x128xf32>
    %14 = tpu.iota {dimensions = array<i32: 0>} : vector<8x1xi32>
    %c2_i32 = arith.constant 2 : i32
    %c0_i32 = arith.constant 0 : i32
    %15 = arith.cmpi eq, %c2_i32, %c0_i32 : i32
    %c1_i32 = arith.constant 1 : i32
    %16 = arith.select %15, %c1_i32, %c2_i32 : i32
    %17 = vector.broadcast %16 : i32 to vector<8x1xi32>
    %18 = arith.remsi %14, %17 : vector<8x1xi32>
    %c0_i32_7 = arith.constant 0 : i32
    %19 = vector.broadcast %c0_i32_7 : i32 to vector<8x1xi32>
    %20 = arith.cmpi ne, %18, %19 : vector<8x1xi32>
    %c0_i32_8 = arith.constant 0 : i32
    %21 = vector.broadcast %c0_i32_8 : i32 to vector<8x1xi32>
    %22 = arith.cmpi slt, %18, %21 : vector<8x1xi32>
    %c0_i32_9 = arith.constant 0 : i32
    %23 = arith.cmpi slt, %16, %c0_i32_9 : i32
    %24 = vector.broadcast %23 : i1 to vector<8x1xi1>
    %25 = vector.broadcast %24 : vector<8x1xi1> to vector<8x1xi1>
    %26 = arith.xori %22, %25 : vector<8x1xi1>
    %27 = arith.andi %26, %20 : vector<8x1xi1>
    %28 = vector.broadcast %16 : i32 to vector<8x1xi32>
    %29 = arith.addi %18, %28 : vector<8x1xi32>
    %30 = arith.select %27, %29, %18 : vector<8x1xi1>, vector<8x1xi32>
    %c0_i32_10 = arith.constant 0 : i32
    %31 = vector.broadcast %c0_i32_10 : i32 to vector<8x1xi32>
    %32 = arith.cmpi sgt, %30, %31 : vector<8x1xi32>
    %c0_11 = arith.constant 0 : index
    %c0_12 = arith.constant 0 : index
    %33 = vector.load %arg2[%c0_11, %c0_12] : memref<24x512xf32, #tpu.memory_space<vmem>>, vector<1x128xf32>
    %c1 = arith.constant 1 : index
    %c0_13 = arith.constant 0 : index
    %34 = vector.load %arg2[%c1, %c0_13] : memref<24x512xf32, #tpu.memory_space<vmem>>, vector<1x128xf32>
    %c2 = arith.constant 2 : index
    %c0_14 = arith.constant 0 : index
    %35 = vector.load %arg2[%c2, %c0_14] : memref<24x512xf32, #tpu.memory_space<vmem>>, vector<1x384xf32>
    %c3 = arith.constant 3 : index
    %c0_15 = arith.constant 0 : index
    %36 = vector.load %arg2[%c3, %c0_15] : memref<24x512xf32, #tpu.memory_space<vmem>>, vector<1x128xf32>
    %c4 = arith.constant 4 : index
    %c0_16 = arith.constant 0 : index
    %37 = vector.load %arg2[%c4, %c0_16] : memref<24x512xf32, #tpu.memory_space<vmem>>, vector<1x128xf32>
    %c5 = arith.constant 5 : index
    %c0_17 = arith.constant 0 : index
    %38 = vector.load %arg2[%c5, %c0_17] : memref<24x512xf32, #tpu.memory_space<vmem>>, vector<1x128xf32>
    %c6 = arith.constant 6 : index
    %c0_18 = arith.constant 0 : index
    %39 = vector.load %arg2[%c6, %c0_18] : memref<24x512xf32, #tpu.memory_space<vmem>>, vector<1x512xf32>
    %c7 = arith.constant 7 : index
    %c0_19 = arith.constant 0 : index
    %40 = vector.load %arg2[%c7, %c0_19] : memref<24x512xf32, #tpu.memory_space<vmem>>, vector<1x128xf32>
    %c0_20 = arith.constant 0 : index
    %c0_21 = arith.constant 0 : index
    %41 = vector.load %arg3[%c0_20, %c0_21] : memref<128x2432xbf16, #tpu.memory_space<vmem>>, vector<128x384xbf16>
    %c0_22 = arith.constant 0 : index
    %c384 = arith.constant 384 : index
    %42 = vector.load %arg3[%c0_22, %c384] : memref<128x2432xbf16, #tpu.memory_space<vmem>>, vector<128x128xbf16>
    %c0_23 = arith.constant 0 : index
    %c512 = arith.constant 512 : index
    %43 = vector.load %arg3[%c0_23, %c512] : memref<128x2432xbf16, #tpu.memory_space<vmem>>, vector<128x512xbf16>
    %c0_24 = arith.constant 0 : index
    %c0_25 = arith.constant 0 : index
    %44 = vector.load %arg4[%c0_24, %c0_25] : memref<1040x128xbf16, #tpu.memory_space<vmem>>, vector<512x128xbf16>
    %cst_26 = arith.constant dense<0.000000e+00> : vector<8xf32>
    %45 = vector.multi_reduction <add>, %13, %cst_26 [1] : vector<8x128xf32> to vector<8xf32>
    %46 = vector.shape_cast %45 : vector<8xf32> to vector<8x1xf32>
    %cst_27 = arith.constant 1.280000e+02 : f32
    %47 = vector.broadcast %cst_27 : f32 to vector<8x1xf32>
    %48 = arith.divf %46, %47 : vector<8x1xf32>
    %49 = vector.broadcast %48 : vector<8x1xf32> to vector<8x128xf32>
    %50 = arith.subf %13, %49 : vector<8x128xf32>
    %51 = arith.mulf %50, %50 : vector<8x128xf32>
    %cst_28 = arith.constant dense<0.000000e+00> : vector<8xf32>
    %52 = vector.multi_reduction <add>, %51, %cst_28 [1] : vector<8x128xf32> to vector<8xf32>
    %53 = vector.shape_cast %52 : vector<8xf32> to vector<8x1xf32>
    %cst_29 = arith.constant 1.280000e+02 : f32
    %54 = vector.broadcast %cst_29 : f32 to vector<8x1xf32>
    %55 = arith.divf %53, %54 : vector<8x1xf32>
    %56 = vector.broadcast %48 : vector<8x1xf32> to vector<8x128xf32>
    %57 = arith.subf %13, %56 : vector<8x128xf32>
    %cst_30 = arith.constant 9.99999974E-6 : f32
    %58 = vector.broadcast %cst_30 : f32 to vector<8x1xf32>
    %59 = arith.addf %55, %58 : vector<8x1xf32>
    %60 = math.rsqrt %59 : vector<8x1xf32>
    %61 = vector.broadcast %60 : vector<8x1xf32> to vector<8x128xf32>
    %62 = arith.mulf %57, %61 : vector<8x128xf32>
    %63 = vector.broadcast %33 : vector<1x128xf32> to vector<8x128xf32>
    %64 = arith.mulf %62, %63 : vector<8x128xf32>
    %65 = vector.broadcast %34 : vector<1x128xf32> to vector<8x128xf32>
    %66 = arith.addf %64, %65 : vector<8x128xf32>
    %67 = arith.truncf %66 : vector<8x128xf32> to vector<8x128xbf16>
    %cst_31 = arith.constant dense<0.000000e+00> : vector<8x384xf32>
    %68 = tpu.matmul %67, %41, %cst_31 {dimension_numbers = #tpu.dot_dimension_numbers<[1], [0], [0], [1], [0, 0, 1, 1], [], []>} : vector<8x128xbf16>, vector<128x384xbf16>, vector<8x384xf32> -> vector<8x384xf32>
    %69 = vector.broadcast %35 : vector<1x384xf32> to vector<8x384xf32>
    %70 = arith.addf %68, %69 : vector<8x384xf32>
    %71 = vector.extract_strided_slice %70 {offsets = [0, 0], sizes = [8, 128], strides = [1, 1]} : vector<8x384xf32> to vector<8x128xf32>
    %72 = vector.extract_strided_slice %70 {offsets = [0, 128], sizes = [8, 128], strides = [1, 1]} : vector<8x384xf32> to vector<8x128xf32>
    %73 = vector.extract_strided_slice %70 {offsets = [0, 256], sizes = [8, 128], strides = [1, 1]} : vector<8x384xf32> to vector<8x128xf32>
    %c1_i32_32 = arith.constant 1 : i32
    %74 = tpu.dynamic_rotate %72 by %c1_i32_32 dim 0 : vector<8x128xf32>, i32 -> vector<8x128xf32>
    %c1_i32_33 = arith.constant 1 : i32
    %75 = tpu.dynamic_rotate %73 by %c1_i32_33 dim 0 : vector<8x128xf32>, i32 -> vector<8x128xf32>
    %76 = arith.mulf %71, %72 : vector<8x128xf32>
    %77 = arith.truncf %76 : vector<8x128xf32> to vector<8x128xbf16>
    %cst_34 = arith.constant dense<0.000000e+00> : vector<8x4xf32>
    %78 = tpu.matmul %77, %2, %cst_34 {dimension_numbers = #tpu.dot_dimension_numbers<[1], [0], [0], [1], [0, 0, 1, 1], [], []>} : vector<8x128xbf16>, vector<128x4xbf16>, vector<8x4xf32> -> vector<8x4xf32>
    %cst_35 = arith.constant 0.176776692 : f32
    %79 = vector.broadcast %cst_35 : f32 to vector<8x4xf32>
    %80 = arith.mulf %78, %79 : vector<8x4xf32>
    %81 = arith.mulf %71, %74 : vector<8x128xf32>
    %82 = arith.truncf %81 : vector<8x128xf32> to vector<8x128xbf16>
    %cst_36 = arith.constant dense<0.000000e+00> : vector<8x4xf32>
    %83 = tpu.matmul %82, %2, %cst_36 {dimension_numbers = #tpu.dot_dimension_numbers<[1], [0], [0], [1], [0, 0, 1, 1], [], []>} : vector<8x128xbf16>, vector<128x4xbf16>, vector<8x4xf32> -> vector<8x4xf32>
    %cst_37 = arith.constant 0.176776692 : f32
    %84 = vector.broadcast %cst_37 : f32 to vector<8x4xf32>
    %85 = arith.mulf %83, %84 : vector<8x4xf32>
    %86 = arith.maximumf %80, %85 : vector<8x4xf32>
    %87 = arith.subf %80, %86 : vector<8x4xf32>
    %88 = math.exp %87 : vector<8x4xf32>
    %89 = arith.subf %85, %86 : vector<8x4xf32>
    %90 = math.exp %89 : vector<8x4xf32>
    %91 = arith.addf %88, %90 : vector<8x4xf32>
    %92 = tpu.reciprocal %91 {approx = true} : vector<8x4xf32> -> vector<8x4xf32>
    %93 = arith.mulf %88, %92 : vector<8x4xf32>
    %cst_38 = arith.constant 1.000000e+00 : f32
    %94 = vector.shape_cast %32 : vector<8x1xi1> to vector<8x1xi1>
    %95 = vector.broadcast %94 : vector<8x1xi1> to vector<8x4xi1>
    %96 = vector.broadcast %cst_38 : f32 to vector<8x4xf32>
    %97 = arith.select %95, %93, %96 : vector<8x4xi1>, vector<8x4xf32>
    %98 = arith.mulf %90, %92 : vector<8x4xf32>
    %cst_39 = arith.constant 0.000000e+00 : f32
    %99 = vector.shape_cast %32 : vector<8x1xi1> to vector<8x1xi1>
    %100 = vector.broadcast %99 : vector<8x1xi1> to vector<8x4xi1>
    %101 = vector.broadcast %cst_39 : f32 to vector<8x4xf32>
    %102 = arith.select %100, %98, %101 : vector<8x4xi1>, vector<8x4xf32>
    %103 = arith.truncf %97 : vector<8x4xf32> to vector<8x4xbf16>
    %cst_40 = arith.constant dense<0.000000e+00> : vector<8x128xf32>
    %104 = tpu.matmul %103, %3, %cst_40 {dimension_numbers = #tpu.dot_dimension_numbers<[1], [0], [0], [1], [0, 0, 1, 1], [], []>} : vector<8x4xbf16>, vector<4x128xbf16>, vector<8x128xf32> -> vector<8x128xf32>
    %105 = arith.mulf %104, %73 : vector<8x128xf32>
    %106 = arith.truncf %102 : vector<8x4xf32> to vector<8x4xbf16>
    %cst_41 = arith.constant dense<0.000000e+00> : vector<8x128xf32>
    %107 = tpu.matmul %106, %3, %cst_41 {dimension_numbers = #tpu.dot_dimension_numbers<[1], [0], [0], [1], [0, 0, 1, 1], [], []>} : vector<8x4xbf16>, vector<4x128xbf16>, vector<8x128xf32> -> vector<8x128xf32>
    %108 = arith.mulf %107, %75 : vector<8x128xf32>
    %109 = arith.addf %105, %108 : vector<8x128xf32>
    %110 = arith.truncf %109 : vector<8x128xf32> to vector<8x128xbf16>
    %cst_42 = arith.constant dense<0.000000e+00> : vector<8x128xf32>
    %111 = tpu.matmul %110, %42, %cst_42 {dimension_numbers = #tpu.dot_dimension_numbers<[1], [0], [0], [1], [0, 0, 1, 1], [], []>} : vector<8x128xbf16>, vector<128x128xbf16>, vector<8x128xf32> -> vector<8x128xf32>
    %112 = arith.addf %13, %111 : vector<8x128xf32>
    %113 = vector.broadcast %36 : vector<1x128xf32> to vector<8x128xf32>
    %114 = arith.addf %112, %113 : vector<8x128xf32>
    %cst_43 = arith.constant dense<0.000000e+00> : vector<8xf32>
    %115 = vector.multi_reduction <add>, %114, %cst_43 [1] : vector<8x128xf32> to vector<8xf32>
    %116 = vector.shape_cast %115 : vector<8xf32> to vector<8x1xf32>
    %cst_44 = arith.constant 1.280000e+02 : f32
    %117 = vector.broadcast %cst_44 : f32 to vector<8x1xf32>
    %118 = arith.divf %116, %117 : vector<8x1xf32>
    %119 = vector.broadcast %118 : vector<8x1xf32> to vector<8x128xf32>
    %120 = arith.subf %114, %119 : vector<8x128xf32>
    %121 = arith.mulf %120, %120 : vector<8x128xf32>
    %cst_45 = arith.constant dense<0.000000e+00> : vector<8xf32>
    %122 = vector.multi_reduction <add>, %121, %cst_45 [1] : vector<8x128xf32> to vector<8xf32>
    %123 = vector.shape_cast %122 : vector<8xf32> to vector<8x1xf32>
    %cst_46 = arith.constant 1.280000e+02 : f32
    %124 = vector.broadcast %cst_46 : f32 to vector<8x1xf32>
    %125 = arith.divf %123, %124 : vector<8x1xf32>
    %126 = vector.broadcast %118 : vector<8x1xf32> to vector<8x128xf32>
    %127 = arith.subf %114, %126 : vector<8x128xf32>
    %cst_47 = arith.constant 9.99999974E-6 : f32
    %128 = vector.broadcast %cst_47 : f32 to vector<8x1xf32>
    %129 = arith.addf %125, %128 : vector<8x1xf32>
    %130 = math.rsqrt %129 : vector<8x1xf32>
    %131 = vector.broadcast %130 : vector<8x1xf32> to vector<8x128xf32>
    %132 = arith.mulf %127, %131 : vector<8x128xf32>
    %133 = vector.broadcast %37 : vector<1x128xf32> to vector<8x128xf32>
    %134 = arith.mulf %132, %133 : vector<8x128xf32>
    %135 = vector.broadcast %38 : vector<1x128xf32> to vector<8x128xf32>
    %136 = arith.addf %134, %135 : vector<8x128xf32>
    %137 = arith.truncf %136 : vector<8x128xf32> to vector<8x128xbf16>
    %cst_48 = arith.constant dense<0.000000e+00> : vector<8x512xf32>
    %138 = tpu.matmul %137, %43, %cst_48 {dimension_numbers = #tpu.dot_dimension_numbers<[1], [0], [0], [1], [0, 0, 1, 1], [], []>} : vector<8x128xbf16>, vector<128x512xbf16>, vector<8x512xf32> -> vector<8x512xf32>
    %139 = vector.broadcast %39 : vector<1x512xf32> to vector<8x512xf32>
    %140 = arith.addf %138, %139 : vector<8x512xf32>
    %cst_49 = arith.constant 5.000000e-01 : f32
    %141 = vector.broadcast %cst_49 : f32 to vector<8x512xf32>
    %142 = arith.mulf %141, %140 : vector<8x512xf32>
    %cst_50 = arith.constant 4.471500e-02 : f32
    %143 = vector.broadcast %cst_50 : f32 to vector<8x512xf32>
    %144 = arith.mulf %143, %140 : vector<8x512xf32>
    %145 = arith.mulf %144, %140 : vector<8x512xf32>
    %146 = arith.mulf %145, %140 : vector<8x512xf32>
    %147 = arith.addf %140, %146 : vector<8x512xf32>
    %cst_51 = arith.constant 0.797884583 : f32
    %148 = vector.broadcast %cst_51 : f32 to vector<8x512xf32>
    %149 = arith.mulf %148, %147 : vector<8x512xf32>
    %150 = math.tanh %149 : vector<8x512xf32>
    %cst_52 = arith.constant 1.000000e+00 : f32
    %151 = vector.broadcast %cst_52 : f32 to vector<8x512xf32>
    %152 = arith.addf %151, %150 : vector<8x512xf32>
    %153 = arith.mulf %142, %152 : vector<8x512xf32>
    %154 = arith.truncf %153 : vector<8x512xf32> to vector<8x512xbf16>
    %cst_53 = arith.constant dense<0.000000e+00> : vector<8x128xf32>
    %155 = tpu.matmul %154, %44, %cst_53 {dimension_numbers = #tpu.dot_dimension_numbers<[1], [0], [0], [1], [0, 0, 1, 1], [], []>} : vector<8x512xbf16>, vector<512x128xbf16>, vector<8x128xf32> -> vector<8x128xf32>
    %156 = arith.addf %114, %155 : vector<8x128xf32>
    %157 = vector.broadcast %40 : vector<1x128xf32> to vector<8x128xf32>
    %158 = arith.addf %156, %157 : vector<8x128xf32>
    %c8 = arith.constant 8 : index
    %c0_54 = arith.constant 0 : index
    %159 = vector.load %arg2[%c8, %c0_54] : memref<24x512xf32, #tpu.memory_space<vmem>>, vector<1x128xf32>
    %c9 = arith.constant 9 : index
    %c0_55 = arith.constant 0 : index
    %160 = vector.load %arg2[%c9, %c0_55] : memref<24x512xf32, #tpu.memory_space<vmem>>, vector<1x128xf32>
    %c10 = arith.constant 10 : index
    %c0_56 = arith.constant 0 : index
    %161 = vector.load %arg2[%c10, %c0_56] : memref<24x512xf32, #tpu.memory_space<vmem>>, vector<1x384xf32>
    %c11 = arith.constant 11 : index
    %c0_57 = arith.constant 0 : index
    %162 = vector.load %arg2[%c11, %c0_57] : memref<24x512xf32, #tpu.memory_space<vmem>>, vector<1x128xf32>
    %c12 = arith.constant 12 : index
    %c0_58 = arith.constant 0 : index
    %163 = vector.load %arg2[%c12, %c0_58] : memref<24x512xf32, #tpu.memory_space<vmem>>, vector<1x128xf32>
    %c13 = arith.constant 13 : index
    %c0_59 = arith.constant 0 : index
    %164 = vector.load %arg2[%c13, %c0_59] : memref<24x512xf32, #tpu.memory_space<vmem>>, vector<1x128xf32>
    %c14 = arith.constant 14 : index
    %c0_60 = arith.constant 0 : index
    %165 = vector.load %arg2[%c14, %c0_60] : memref<24x512xf32, #tpu.memory_space<vmem>>, vector<1x512xf32>
    %c15 = arith.constant 15 : index
    %c0_61 = arith.constant 0 : index
    %166 = vector.load %arg2[%c15, %c0_61] : memref<24x512xf32, #tpu.memory_space<vmem>>, vector<1x128xf32>
    %c0_62 = arith.constant 0 : index
    %c1024_63 = arith.constant 1024 : index
    %167 = vector.load %arg3[%c0_62, %c1024_63] : memref<128x2432xbf16, #tpu.memory_space<vmem>>, vector<128x384xbf16>
    %c0_64 = arith.constant 0 : index
    %c1408 = arith.constant 1408 : index
    %168 = vector.load %arg3[%c0_64, %c1408] : memref<128x2432xbf16, #tpu.memory_space<vmem>>, vector<128x128xbf16>
    %c0_65 = arith.constant 0 : index
    %c1536 = arith.constant 1536 : index
    %169 = vector.load %arg3[%c0_65, %c1536] : memref<128x2432xbf16, #tpu.memory_space<vmem>>, vector<128x512xbf16>
    %c512_66 = arith.constant 512 : index
    %c0_67 = arith.constant 0 : index
    %170 = vector.load %arg4[%c512_66, %c0_67] : memref<1040x128xbf16, #tpu.memory_space<vmem>>, vector<512x128xbf16>
    %cst_68 = arith.constant dense<0.000000e+00> : vector<8xf32>
    %171 = vector.multi_reduction <add>, %158, %cst_68 [1] : vector<8x128xf32> to vector<8xf32>
    %172 = vector.shape_cast %171 : vector<8xf32> to vector<8x1xf32>
    %cst_69 = arith.constant 1.280000e+02 : f32
    %173 = vector.broadcast %cst_69 : f32 to vector<8x1xf32>
    %174 = arith.divf %172, %173 : vector<8x1xf32>
    %175 = vector.broadcast %174 : vector<8x1xf32> to vector<8x128xf32>
    %176 = arith.subf %158, %175 : vector<8x128xf32>
    %177 = arith.mulf %176, %176 : vector<8x128xf32>
    %cst_70 = arith.constant dense<0.000000e+00> : vector<8xf32>
    %178 = vector.multi_reduction <add>, %177, %cst_70 [1] : vector<8x128xf32> to vector<8xf32>
    %179 = vector.shape_cast %178 : vector<8xf32> to vector<8x1xf32>
    %cst_71 = arith.constant 1.280000e+02 : f32
    %180 = vector.broadcast %cst_71 : f32 to vector<8x1xf32>
    %181 = arith.divf %179, %180 : vector<8x1xf32>
    %182 = vector.broadcast %174 : vector<8x1xf32> to vector<8x128xf32>
    %183 = arith.subf %158, %182 : vector<8x128xf32>
    %cst_72 = arith.constant 9.99999974E-6 : f32
    %184 = vector.broadcast %cst_72 : f32 to vector<8x1xf32>
    %185 = arith.addf %181, %184 : vector<8x1xf32>
    %186 = math.rsqrt %185 : vector<8x1xf32>
    %187 = vector.broadcast %186 : vector<8x1xf32> to vector<8x128xf32>
    %188 = arith.mulf %183, %187 : vector<8x128xf32>
    %189 = vector.broadcast %159 : vector<1x128xf32> to vector<8x128xf32>
    %190 = arith.mulf %188, %189 : vector<8x128xf32>
    %191 = vector.broadcast %160 : vector<1x128xf32> to vector<8x128xf32>
    %192 = arith.addf %190, %191 : vector<8x128xf32>
    %193 = arith.truncf %192 : vector<8x128xf32> to vector<8x128xbf16>
    %cst_73 = arith.constant dense<0.000000e+00> : vector<8x384xf32>
    %194 = tpu.matmul %193, %167, %cst_73 {dimension_numbers = #tpu.dot_dimension_numbers<[1], [0], [0], [1], [0, 0, 1, 1], [], []>} : vector<8x128xbf16>, vector<128x384xbf16>, vector<8x384xf32> -> vector<8x384xf32>
    %195 = vector.broadcast %161 : vector<1x384xf32> to vector<8x384xf32>
    %196 = arith.addf %194, %195 : vector<8x384xf32>
    %197 = vector.extract_strided_slice %196 {offsets = [0, 0], sizes = [8, 128], strides = [1, 1]} : vector<8x384xf32> to vector<8x128xf32>
    %198 = vector.extract_strided_slice %196 {offsets = [0, 128], sizes = [8, 128], strides = [1, 1]} : vector<8x384xf32> to vector<8x128xf32>
    %199 = vector.extract_strided_slice %196 {offsets = [0, 256], sizes = [8, 128], strides = [1, 1]} : vector<8x384xf32> to vector<8x128xf32>
    %c1_i32_74 = arith.constant 1 : i32
    %200 = tpu.dynamic_rotate %198 by %c1_i32_74 dim 0 : vector<8x128xf32>, i32 -> vector<8x128xf32>
    %c1_i32_75 = arith.constant 1 : i32
    %201 = tpu.dynamic_rotate %199 by %c1_i32_75 dim 0 : vector<8x128xf32>, i32 -> vector<8x128xf32>
    %202 = arith.mulf %197, %198 : vector<8x128xf32>
    %203 = arith.truncf %202 : vector<8x128xf32> to vector<8x128xbf16>
    %cst_76 = arith.constant dense<0.000000e+00> : vector<8x4xf32>
    %204 = tpu.matmul %203, %2, %cst_76 {dimension_numbers = #tpu.dot_dimension_numbers<[1], [0], [0], [1], [0, 0, 1, 1], [], []>} : vector<8x128xbf16>, vector<128x4xbf16>, vector<8x4xf32> -> vector<8x4xf32>
    %cst_77 = arith.constant 0.176776692 : f32
    %205 = vector.broadcast %cst_77 : f32 to vector<8x4xf32>
    %206 = arith.mulf %204, %205 : vector<8x4xf32>
    %207 = arith.mulf %197, %200 : vector<8x128xf32>
    %208 = arith.truncf %207 : vector<8x128xf32> to vector<8x128xbf16>
    %cst_78 = arith.constant dense<0.000000e+00> : vector<8x4xf32>
    %209 = tpu.matmul %208, %2, %cst_78 {dimension_numbers = #tpu.dot_dimension_numbers<[1], [0], [0], [1], [0, 0, 1, 1], [], []>} : vector<8x128xbf16>, vector<128x4xbf16>, vector<8x4xf32> -> vector<8x4xf32>
    %cst_79 = arith.constant 0.176776692 : f32
    %210 = vector.broadcast %cst_79 : f32 to vector<8x4xf32>
    %211 = arith.mulf %209, %210 : vector<8x4xf32>
    %212 = arith.maximumf %206, %211 : vector<8x4xf32>
    %213 = arith.subf %206, %212 : vector<8x4xf32>
    %214 = math.exp %213 : vector<8x4xf32>
    %215 = arith.subf %211, %212 : vector<8x4xf32>
    %216 = math.exp %215 : vector<8x4xf32>
    %217 = arith.addf %214, %216 : vector<8x4xf32>
    %218 = tpu.reciprocal %217 {approx = true} : vector<8x4xf32> -> vector<8x4xf32>
    %219 = arith.mulf %214, %218 : vector<8x4xf32>
    %cst_80 = arith.constant 1.000000e+00 : f32
    %220 = vector.shape_cast %32 : vector<8x1xi1> to vector<8x1xi1>
    %221 = vector.broadcast %220 : vector<8x1xi1> to vector<8x4xi1>
    %222 = vector.broadcast %cst_80 : f32 to vector<8x4xf32>
    %223 = arith.select %221, %219, %222 : vector<8x4xi1>, vector<8x4xf32>
    %224 = arith.mulf %216, %218 : vector<8x4xf32>
    %cst_81 = arith.constant 0.000000e+00 : f32
    %225 = vector.shape_cast %32 : vector<8x1xi1> to vector<8x1xi1>
    %226 = vector.broadcast %225 : vector<8x1xi1> to vector<8x4xi1>
    %227 = vector.broadcast %cst_81 : f32 to vector<8x4xf32>
    %228 = arith.select %226, %224, %227 : vector<8x4xi1>, vector<8x4xf32>
    %229 = arith.truncf %223 : vector<8x4xf32> to vector<8x4xbf16>
    %cst_82 = arith.constant dense<0.000000e+00> : vector<8x128xf32>
    %230 = tpu.matmul %229, %3, %cst_82 {dimension_numbers = #tpu.dot_dimension_numbers<[1], [0], [0], [1], [0, 0, 1, 1], [], []>} : vector<8x4xbf16>, vector<4x128xbf16>, vector<8x128xf32> -> vector<8x128xf32>
    %231 = arith.mulf %230, %199 : vector<8x128xf32>
    %232 = arith.truncf %228 : vector<8x4xf32> to vector<8x4xbf16>
    %cst_83 = arith.constant dense<0.000000e+00> : vector<8x128xf32>
    %233 = tpu.matmul %232, %3, %cst_83 {dimension_numbers = #tpu.dot_dimension_numbers<[1], [0], [0], [1], [0, 0, 1, 1], [], []>} : vector<8x4xbf16>, vector<4x128xbf16>, vector<8x128xf32> -> vector<8x128xf32>
    %234 = arith.mulf %233, %201 : vector<8x128xf32>
    %235 = arith.addf %231, %234 : vector<8x128xf32>
    %236 = arith.truncf %235 : vector<8x128xf32> to vector<8x128xbf16>
    %cst_84 = arith.constant dense<0.000000e+00> : vector<8x128xf32>
    %237 = tpu.matmul %236, %168, %cst_84 {dimension_numbers = #tpu.dot_dimension_numbers<[1], [0], [0], [1], [0, 0, 1, 1], [], []>} : vector<8x128xbf16>, vector<128x128xbf16>, vector<8x128xf32> -> vector<8x128xf32>
    %238 = arith.addf %158, %237 : vector<8x128xf32>
    %239 = vector.broadcast %162 : vector<1x128xf32> to vector<8x128xf32>
    %240 = arith.addf %238, %239 : vector<8x128xf32>
    %cst_85 = arith.constant dense<0.000000e+00> : vector<8xf32>
    %241 = vector.multi_reduction <add>, %240, %cst_85 [1] : vector<8x128xf32> to vector<8xf32>
    %242 = vector.shape_cast %241 : vector<8xf32> to vector<8x1xf32>
    %cst_86 = arith.constant 1.280000e+02 : f32
    %243 = vector.broadcast %cst_86 : f32 to vector<8x1xf32>
    %244 = arith.divf %242, %243 : vector<8x1xf32>
    %245 = vector.broadcast %244 : vector<8x1xf32> to vector<8x128xf32>
    %246 = arith.subf %240, %245 : vector<8x128xf32>
    %247 = arith.mulf %246, %246 : vector<8x128xf32>
    %cst_87 = arith.constant dense<0.000000e+00> : vector<8xf32>
    %248 = vector.multi_reduction <add>, %247, %cst_87 [1] : vector<8x128xf32> to vector<8xf32>
    %249 = vector.shape_cast %248 : vector<8xf32> to vector<8x1xf32>
    %cst_88 = arith.constant 1.280000e+02 : f32
    %250 = vector.broadcast %cst_88 : f32 to vector<8x1xf32>
    %251 = arith.divf %249, %250 : vector<8x1xf32>
    %252 = vector.broadcast %244 : vector<8x1xf32> to vector<8x128xf32>
    %253 = arith.subf %240, %252 : vector<8x128xf32>
    %cst_89 = arith.constant 9.99999974E-6 : f32
    %254 = vector.broadcast %cst_89 : f32 to vector<8x1xf32>
    %255 = arith.addf %251, %254 : vector<8x1xf32>
    %256 = math.rsqrt %255 : vector<8x1xf32>
    %257 = vector.broadcast %256 : vector<8x1xf32> to vector<8x128xf32>
    %258 = arith.mulf %253, %257 : vector<8x128xf32>
    %259 = vector.broadcast %163 : vector<1x128xf32> to vector<8x128xf32>
    %260 = arith.mulf %258, %259 : vector<8x128xf32>
    %261 = vector.broadcast %164 : vector<1x128xf32> to vector<8x128xf32>
    %262 = arith.addf %260, %261 : vector<8x128xf32>
    %263 = arith.truncf %262 : vector<8x128xf32> to vector<8x128xbf16>
    %cst_90 = arith.constant dense<0.000000e+00> : vector<8x512xf32>
    %264 = tpu.matmul %263, %169, %cst_90 {dimension_numbers = #tpu.dot_dimension_numbers<[1], [0], [0], [1], [0, 0, 1, 1], [], []>} : vector<8x128xbf16>, vector<128x512xbf16>, vector<8x512xf32> -> vector<8x512xf32>
    %265 = vector.broadcast %165 : vector<1x512xf32> to vector<8x512xf32>
    %266 = arith.addf %264, %265 : vector<8x512xf32>
    %cst_91 = arith.constant 5.000000e-01 : f32
    %267 = vector.broadcast %cst_91 : f32 to vector<8x512xf32>
    %268 = arith.mulf %267, %266 : vector<8x512xf32>
    %cst_92 = arith.constant 4.471500e-02 : f32
    %269 = vector.broadcast %cst_92 : f32 to vector<8x512xf32>
    %270 = arith.mulf %269, %266 : vector<8x512xf32>
    %271 = arith.mulf %270, %266 : vector<8x512xf32>
    %272 = arith.mulf %271, %266 : vector<8x512xf32>
    %273 = arith.addf %266, %272 : vector<8x512xf32>
    %cst_93 = arith.constant 0.797884583 : f32
    %274 = vector.broadcast %cst_93 : f32 to vector<8x512xf32>
    %275 = arith.mulf %274, %273 : vector<8x512xf32>
    %276 = math.tanh %275 : vector<8x512xf32>
    %cst_94 = arith.constant 1.000000e+00 : f32
    %277 = vector.broadcast %cst_94 : f32 to vector<8x512xf32>
    %278 = arith.addf %277, %276 : vector<8x512xf32>
    %279 = arith.mulf %268, %278 : vector<8x512xf32>
    %280 = arith.truncf %279 : vector<8x512xf32> to vector<8x512xbf16>
    %cst_95 = arith.constant dense<0.000000e+00> : vector<8x128xf32>
    %281 = tpu.matmul %280, %170, %cst_95 {dimension_numbers = #tpu.dot_dimension_numbers<[1], [0], [0], [1], [0, 0, 1, 1], [], []>} : vector<8x512xbf16>, vector<512x128xbf16>, vector<8x128xf32> -> vector<8x128xf32>
    %282 = arith.addf %240, %281 : vector<8x128xf32>
    %283 = vector.broadcast %166 : vector<1x128xf32> to vector<8x128xf32>
    %284 = arith.addf %282, %283 : vector<8x128xf32>
    %c16 = arith.constant 16 : index
    %c0_96 = arith.constant 0 : index
    %285 = vector.load %arg2[%c16, %c0_96] : memref<24x512xf32, #tpu.memory_space<vmem>>, vector<1x128xf32>
    %c17 = arith.constant 17 : index
    %c0_97 = arith.constant 0 : index
    %286 = vector.load %arg2[%c17, %c0_97] : memref<24x512xf32, #tpu.memory_space<vmem>>, vector<1x128xf32>
    %cst_98 = arith.constant dense<0.000000e+00> : vector<8xf32>
    %287 = vector.multi_reduction <add>, %284, %cst_98 [1] : vector<8x128xf32> to vector<8xf32>
    %288 = vector.shape_cast %287 : vector<8xf32> to vector<8x1xf32>
    %cst_99 = arith.constant 1.280000e+02 : f32
    %289 = vector.broadcast %cst_99 : f32 to vector<8x1xf32>
    %290 = arith.divf %288, %289 : vector<8x1xf32>
    %291 = vector.broadcast %290 : vector<8x1xf32> to vector<8x128xf32>
    %292 = arith.subf %284, %291 : vector<8x128xf32>
    %293 = arith.mulf %292, %292 : vector<8x128xf32>
    %cst_100 = arith.constant dense<0.000000e+00> : vector<8xf32>
    %294 = vector.multi_reduction <add>, %293, %cst_100 [1] : vector<8x128xf32> to vector<8xf32>
    %295 = vector.shape_cast %294 : vector<8xf32> to vector<8x1xf32>
    %cst_101 = arith.constant 1.280000e+02 : f32
    %296 = vector.broadcast %cst_101 : f32 to vector<8x1xf32>
    %297 = arith.divf %295, %296 : vector<8x1xf32>
    %298 = vector.broadcast %290 : vector<8x1xf32> to vector<8x128xf32>
    %299 = arith.subf %284, %298 : vector<8x128xf32>
    %cst_102 = arith.constant 9.99999974E-6 : f32
    %300 = vector.broadcast %cst_102 : f32 to vector<8x1xf32>
    %301 = arith.addf %297, %300 : vector<8x1xf32>
    %302 = math.rsqrt %301 : vector<8x1xf32>
    %303 = vector.broadcast %302 : vector<8x1xf32> to vector<8x128xf32>
    %304 = arith.mulf %299, %303 : vector<8x128xf32>
    %305 = vector.broadcast %285 : vector<1x128xf32> to vector<8x128xf32>
    %306 = arith.mulf %304, %305 : vector<8x128xf32>
    %307 = vector.broadcast %286 : vector<1x128xf32> to vector<8x128xf32>
    %308 = arith.addf %306, %307 : vector<8x128xf32>
    %309 = arith.truncf %308 : vector<8x128xf32> to vector<8x128xbf16>
    %cst_103 = arith.constant dense<0.000000e+00> : vector<8x128xf32>
    %310 = tpu.matmul %309, %1, %cst_103 {dimension_numbers = #tpu.dot_dimension_numbers<[1], [0], [0], [1], [0, 0, 1, 1], [], []>} : vector<8x128xbf16>, vector<128x128xbf16>, vector<8x128xf32> -> vector<8x128xf32>
    %c0_104 = arith.constant 0 : index
    %c0_105 = arith.constant 0 : index
    %311 = vector.load %arg5[%c0_104, %c0_105] : memref<8x128xf32, #tpu.memory_space<vmem>>, vector<8x128xf32>
    tpu.vector_store %arg5[%c0_104, %c0_105], %310 {strides = array<i32>} : memref<8x128xf32, #tpu.memory_space<vmem>>, vector<8x128xf32>,
    return
  }
}

</mosaic_0001>

<llo_original>
// kernel: tpu_custom_call.1
$region0: #{tpu_custom_call.1}
  #allocation0 [shape = 'u32[]', space=smem, size = 0x4, offset = 0x4, fixed_abs, tag = 'smem constant byte address 0x4 - core index']
  #allocation1 [shape = 'u32[72,128]{1,0:T(1,128)}', space=vmem, size = 0x9000, scoped, tag = 'internal scratch']
  %s0 = inlined_call_operand.vmem [shape: s32[8,1], index: 0, kind: input, shape index: {}]
  %s1 = inlined_call_operand.vmem [shape: f32[8,128], index: 1, kind: input, shape index: {}]
  %s2 = inlined_call_operand.hbm [shape: f32[24,512], index: 2, kind: input, shape index: {}]
  %s3 = inlined_call_operand.hbm [shape: bf16[128,2432], index: 3, kind: input, shape index: {}]
  %s4 = inlined_call_operand.hbm [shape: bf16[1040,128], index: 4, kind: input, shape index: {}]
  %s5 = inlined_call_operand.hbm [shape: f32[8,128], index: 5, kind: output, shape index: {}]
  %s6 = sld [smem:[#allocation0]]
  $region42: #{tpu_custom_call.1} parent=0
    _
  %s8 = ssub.s32 1, %s6
  %s9 = scalar_select 0, %s8, %s6
  $region1: #{tpu_custom_call.1} parent=0
    #allocation2 [shape = 'u8[49152]{0}', space=vmem, size = 0xc000, scoped, tag = 'input window, operand 2, single buffered']
    #allocation3 [shape = 's32[1]{0}', space=sflag, size = 0x4, scoped, tag = 'scoped memory for tpu_custom_call.1']
    #allocation4 [shape = 's32[1]{0}', space=sflag, size = 0x4, scoped, tag = 'scoped memory for tpu_custom_call.1']
    #allocation5 [shape = 'u8[622592]{0}', space=vmem, size = 0x98000, scoped, tag = 'input window, operand 3, single buffered']
    #allocation6 [shape = 's32[1]{0}', space=sflag, size = 0x4, scoped, tag = 'scoped memory for tpu_custom_call.1']
    #allocation7 [shape = 'u8[266240]{0}', space=vmem, size = 0x41000, scoped, tag = 'input window, operand 4, single buffered']
    #allocation8 [shape = 'u8[4096]{0}', space=vmem, size = 0x1000, scoped, tag = 'output window, operand 0, single buffered']
    %10 = vsyncpa [#allocation3], 0
    %11 = vsyncpa [#allocation6], 0
    %12 = vsyncpa [#allocation4], 0
    // Predicated region
    $region2: #{tpu_custom_call.1} parent=1 // pred_check
      _
    $region3: #{tpu_custom_call.1} parent=1 // pred_check_branch
      %14 = sbr.rel (0) target = $region5
    $region4: #{tpu_custom_call.1} parent=1 // pred_region
      _
    $region5: #{tpu_custom_call.1} parent=1 // pred_fallthru
      _
    // Predicated region
    $region6: #{tpu_custom_call.1} parent=1 // pred_check
      _
    $region7: #{tpu_custom_call.1} parent=1 // pred_check_branch
      %16 = sbr.rel (0) target = $region9
    $region8: #{tpu_custom_call.1} parent=1 // pred_region
      _
    $region9: #{tpu_custom_call.1} parent=1 // pred_fallthru
      _
    // Predicated region
    $region10: #{tpu_custom_call.1} parent=1 // pred_check
      _
    $region11: #{tpu_custom_call.1} parent=1 // pred_check_branch
      %18 = sbr.rel (0) target = $region13
    $region12: #{tpu_custom_call.1} parent=1 // pred_region
      %20 = vsyncadd [#allocation3], 0
      %s21 = sshll.u32 %s2, 4
      %s22 = int_to_ptr.hbm [resolvable:$true] %s21
      %s23 = sshll.u32 [#allocation2], 4
      %s24 = int_to_ptr.vmem [resolvable:$true] %s23
      %29 = dma.hbm_to_vmem [thread:$0]  %s22, 1536, %s24, [#allocation3], 512, 512, 32
    $region13: #{tpu_custom_call.1} parent=1 // pred_fallthru
      _
    // Predicated region
    $region14: #{tpu_custom_call.1} parent=1 // pred_check
      _
    $region15: #{tpu_custom_call.1} parent=1 // pred_check_branch
      %31 = sbr.rel (0) target = $region17
    $region16: #{tpu_custom_call.1} parent=1 // pred_region
      %33 = vsyncadd [#allocation6], 0
      %s34 = sshll.u32 %s3, 4
      %s35 = int_to_ptr.hbm [resolvable:$true] %s34
      %s36 = sshll.u32 [#allocation5], 4
      %s37 = int_to_ptr.vmem [resolvable:$true] %s36
      %42 = dma.hbm_to_vmem [thread:$0]  %s35, 19456, %s37, [#allocation6], 1216, 1216, 76
    $region17: #{tpu_custom_call.1} parent=1 // pred_fallthru
      _
    // Predicated region
    $region18: #{tpu_custom_call.1} parent=1 // pred_check
      _
    $region19: #{tpu_custom_call.1} parent=1 // pred_check_branch
      %44 = sbr.rel (0) target = $region21
    $region20: #{tpu_custom_call.1} parent=1 // pred_region
      %46 = vsyncadd [#allocation6], 0
      %s47 = sshll.u32 %s4, 4
      %s48 = int_to_ptr.hbm [resolvable:$true] %s47
      %s49 = sshll.u32 [#allocation7], 4
      %s50 = int_to_ptr.vmem [resolvable:$true] %s49
      %55 = dma.hbm_to_vmem [thread:$0]  %s48, 8320, %s50, [#allocation6], 64, 64, 4
    $region21: #{tpu_custom_call.1} parent=1 // pred_fallthru
      _
    // Predicated region
    $region22: #{tpu_custom_call.1} parent=1 // pred_check
      _
    $region23: #{tpu_custom_call.1} parent=1 // pred_check_branch
      %57 = sbr.rel (0) target = $region25
    $region24: #{tpu_custom_call.1} parent=1 // pred_region
      %59 = dma.done [#allocation3], 1536
    $region25: #{tpu_custom_call.1} parent=1 // pred_fallthru
      _
    // Predicated region
    $region26: #{tpu_custom_call.1} parent=1 // pred_check
      _
    $region27: #{tpu_custom_call.1} parent=1 // pred_check_branch
      %61 = sbr.rel (0) target = $region29
    $region28: #{tpu_custom_call.1} parent=1 // pred_region
      %63 = dma.done [#allocation6], 19456
    $region29: #{tpu_custom_call.1} parent=1 // pred_fallthru
      _
    // Predicated region
    $region30: #{tpu_custom_call.1} parent=1 // pred_check
      _
    $region31: #{tpu_custom_call.1} parent=1 // pred_check_branch
      %65 = sbr.rel (0) target = $region33
    $region32: #{tpu_custom_call.1} parent=1 // pred_region
      %67 = dma.done [#allocation6], 8320
    $region33: #{tpu_custom_call.1} parent=1 // pred_fallthru
      _
    %v69 = vld [vmem:[#allocation5 + $0x40] sm:$0xf]
    %v70 = vld [vmem:[#allocation5 + $0x8c] sm:$0xf]
    %v71 = vld [vmem:[#allocation5 + $0xd8] sm:$0xf]
    %v72 = vld [vmem:[#allocation5 + $0x124] sm:$0xf]
    %v73 = vld [vmem:[#allocation5 + $0x170] sm:$0xf]
    %v74 = vld [vmem:[#allocation5 + $0x1bc] sm:$0xf]
    %v75 = vld [vmem:[#allocation5 + $0x208] sm:$0xf]
    %v76 = vld [vmem:[#allocation5 + $0x254] sm:$0xf]
    %v77 = vld [vmem:[#allocation5 + $0x2a0] sm:$0xf]
    %v78 = vld [vmem:[#allocation5 + $0x2ec] sm:$0xf]
    %v79 = vld [vmem:[#allocation5 + $0x338] sm:$0xf]
    %v80 = vld [vmem:[#allocation5 + $0x384] sm:$0xf]
    %v81 = vld [vmem:[#allocation5 + $0x3d0] sm:$0xf]
    %v82 = vld [vmem:[#allocation5 + $0x41c] sm:$0xf]
    %v83 = vld [vmem:[#allocation5 + $0x468] sm:$0xf]
    %v84 = vld [vmem:[#allocation5 + $0x4b4] sm:$0xf]
    %v85 = vld [vmem:[#allocation5 + $0x44] sm:$0xf]
    %v86 = vld [vmem:[#allocation5 + $0x90] sm:$0xf]
    %v87 = vld [vmem:[#allocation5 + $0xdc] sm:$0xf]
    %v88 = vld [vmem:[#allocation5 + $0x128] sm:$0xf]
    %v89 = vld [vmem:[#allocation5 + $0x174] sm:$0xf]
    %v90 = vld [vmem:[#allocation5 + $0x1c0] sm:$0xf]
    %v91 = vld [vmem:[#allocation5 + $0x20c] sm:$0xf]
    %v92 = vld [vmem:[#allocation5 + $0x258] sm:$0xf]
    %v93 = vld [vmem:[#allocation5 + $0x2a4] sm:$0xf]
    %v94 = vld [vmem:[#allocation5 + $0x2f0] sm:$0xf]
    %v95 = vld [vmem:[#allocation5 + $0x33c] sm:$0xf]
    %v96 = vld [vmem:[#allocation5 + $0x388] sm:$0xf]
    %v97 = vld [vmem:[#allocation5 + $0x3d4] sm:$0xf]
    %v98 = vld [vmem:[#allocation5 + $0x420] sm:$0xf]
    %v99 = vld [vmem:[#allocation5 + $0x46c] sm:$0xf]
    %v100 = vld [vmem:[#allocation5 + $0x4b8] sm:$0xf]
    %v101 = vld [vmem:[#allocation5 + $0x48] sm:$0xf]
    %v102 = vld [vmem:[#allocation5 + $0x94] sm:$0xf]
    %v103 = vld [vmem:[#allocation5 + $0xe0] sm:$0xf]
    %v104 = vld [vmem:[#allocation5 + $0x12c] sm:$0xf]
    %v105 = vld [vmem:[#allocation5 + $0x178] sm:$0xf]
    %v106 = vld [vmem:[#allocation5 + $0x1c4] sm:$0xf]
    %v107 = vld [vmem:[#allocation5 + $0x210] sm:$0xf]
    %v108 = vld [vmem:[#allocation5 + $0x25c] sm:$0xf]
    %v109 = vld [vmem:[#allocation5 + $0x2a8] sm:$0xf]
    %v110 = vld [vmem:[#allocation5 + $0x2f4] sm:$0xf]
    %v111 = vld [vmem:[#allocation5 + $0x340] sm:$0xf]
    %v112 = vld [vmem:[#allocation5 + $0x38c] sm:$0xf]
    %v113 = vld [vmem:[#allocation5 + $0x3d8] sm:$0xf]
    %v114 = vld [vmem:[#allocation5 + $0x424] sm:$0xf]
    %v115 = vld [vmem:[#allocation5 + $0x470] sm:$0xf]
    %v116 = vld [vmem:[#allocation5 + $0x4bc] sm:$0xf]
    %v117 = vld [vmem:[#allocation7 + $0x200] sm:$0x3]
    %v118 = vld [vmem:[%s0] sm:$0xff]
    %v119 = vlaneseq
    %v120 = vand.u32 %v119, 127
    %121 = vset.pattern.permute.xlu0 0
    %122 = vperm.xlu0 %121, %v118
    %v123 = vpop.permute.xlu0 %122
    %vm124 = vcmp.eq.s32.totalorder %v123, %v120
    %v125 = vsel %vm124, 1, 0
    %v126 = vcvt.s32.f32 %v125
    %v127 = vpack.c.bf16 %v126, %v126
    %v128 = vld [vmem:[%s1] sm:$0xff]
    %v145 = vunpack.c.l.b16 %v69
    %v146 = vunpack.c.l.b16 %v70
    %v147 = vunpack.c.l.b16 %v71
    %v148 = vunpack.c.l.b16 %v72
    %v149 = vunpack.c.l.b16 %v73
    %v150 = vunpack.c.l.b16 %v74
    %v151 = vunpack.c.l.b16 %v75
    %v152 = vunpack.c.l.b16 %v76
    %v153 = vunpack.c.l.b16 %v77
    %v154 = vunpack.c.l.b16 %v78
    %v155 = vunpack.c.l.b16 %v79
    %v156 = vunpack.c.l.b16 %v80
    %v157 = vunpack.c.l.b16 %v81
    %v158 = vunpack.c.l.b16 %v82
    %v159 = vunpack.c.l.b16 %v83
    %v160 = vunpack.c.l.b16 %v84
    %v161 = vpack.c.b16 %v146, %v145
    %v162 = vpack.c.b16 %v148, %v147
    %v163 = vpack.c.b16 %v150, %v149
    %v164 = vpack.c.b16 %v152, %v151
    %v165 = vpack.c.b16 %v154, %v153
    %v166 = vpack.c.b16 %v156, %v155
    %v167 = vpack.c.b16 %v158, %v157
    %v168 = vpack.c.b16 %v160, %v159
    %177 = vmatpush.bf16.msra.mxu0 %v168
    %178 = vmatpush.bf16.msra.mxu0 %v167
    %179 = vmatpush.bf16.msra.mxu0 %v166
    %180 = vmatpush.bf16.msra.mxu0 %v165
    %181 = vmatpush.bf16.msra.mxu0 %v164
    %182 = vmatpush.bf16.msra.mxu0 %v163
    %183 = vmatpush.bf16.msra.mxu0 %v162
    %184 = vmatpush.bf16.msra.mxu0 %v161
    %185 = vmatmul.bf16.gmra.mxu0 %v127
    %v186 = vpop.f32.mrf.mxu0
    %v187 = vadd.f32 %v128, %v186
    %v188 = vpop.f32.mrf.mxu0
    %189 = vdwg.mxu0
    %v190 = vlaneseq
    %v191 = vshrl.u32 %v190, 7
    %vm192 = vcmp.lt.s32.totalorder %v191, 0
    %v193 = vsub.s32 0, %v191
    %v194 = vsel %vm192, %v193, %v191
    %v195 = vshrl.u32 %v194, 1
    %v196 = vand.u32 %v194, 1
    %v197 = vsub.s32 0, %v196
    %v198 = vsel %vm192, %v197, %v196
    %vm199 = vcmp.ne.s32.totalorder %v198, 0
    %vm200 = vcmp.lt.s32.totalorder %v198, 0
    %vm201 = vmand %vm200, %vm199
    %v202 = vadd.s32 %v198, 2
    %v203 = vsel %vm201, %v202, %v198
    %vm204 = vcmp.gt.s32.totalorder %v203, 0
    %v205 = vld [vmem:[#allocation2] ss:$0 sm:$0xff]
    %v206 = vld [vmem:[#allocation2 + $0x1] ss:$0 sm:$0xff]
    %s207 = scalar_lea.vmem [#allocation2], 2
    %v208 = vld [vmem:[%s207] ss:$8 sm:$0x7]
    %v209 = vld [vmem:[#allocation2 + $0x3] ss:$0 sm:$0xff]
    %v210 = vld [vmem:[#allocation2 + $0x4] ss:$0 sm:$0xff]
    %v211 = vld [vmem:[#allocation2 + $0x5] ss:$0 sm:$0xff]
    %s212 = scalar_lea.vmem [#allocation2], 6
    %v213 = vld [vmem:[%s212] ss:$8 sm:$0xf]
    %v214 = vld [vmem:[#allocation2 + $0x7] ss:$0 sm:$0xff]
    %v215 = vld [vmem:[#allocation5] sm:$0xff]
    %v216 = vld [vmem:[#allocation5 + $0x8] sm:$0xf]
    %v217 = vld [vmem:[#allocation5 + $0x4c] sm:$0xff]
    %v218 = vld [vmem:[#allocation5 + $0x54] sm:$0xf]
    %v219 = vld [vmem:[#allocation5 + $0x98] sm:$0xff]
    %v220 = vld [vmem:[#allocation5 + $0xa0] sm:$0xf]
    %v221 = vld [vmem:[#allocation5 + $0xe4] sm:$0xff]
    %v222 = vld [vmem:[#allocation5 + $0xec] sm:$0xf]
    %v223 = vld [vmem:[#allocation5 + $0x130] sm:$0xff]
    %v224 = vld [vmem:[#allocation5 + $0x138] sm:$0xf]
    %v225 = vld [vmem:[#allocation5 + $0x17c] sm:$0xff]
    %v226 = vld [vmem:[#allocation5 + $0x184] sm:$0xf]
    %v227 = vld [vmem:[#allocation5 + $0x1c8] sm:$0xff]
    %v228 = vld [vmem:[#allocation5 + $0x1d0] sm:$0xf]
    %v229 = vld [vmem:[#allocation5 + $0x214] sm:$0xff]
    %v230 = vld [vmem:[#allocation5 + $0x21c] sm:$0xf]
    %v231 = vld [vmem:[#allocation5 + $0x260] sm:$0xff]
    %v232 = vld [vmem:[#allocation5 + $0x268] sm:$0xf]
    %v233 = vld [vmem:[#allocation5 + $0x2ac] sm:$0xff]
    %v234 = vld [vmem:[#allocation5 + $0x2b4] sm:$0xf]
    %v235 = vld [vmem:[#allocation5 + $0x2f8] sm:$0xff]
    %v236 = vld [vmem:[#allocation5 + $0x300] sm:$0xf]
    %v237 = vld [vmem:[#allocation5 + $0x344] sm:$0xff]
    %v238 = vld [vmem:[#allocation5 + $0x34c] sm:$0xf]
    %v239 = vld [vmem:[#allocation5 + $0x390] sm:$0xff]
    %v240 = vld [vmem:[#allocation5 + $0x398] sm:$0xf]
    %v241 = vld [vmem:[#allocation5 + $0x3dc] sm:$0xff]
    %v242 = vld [vmem:[#allocation5 + $0x3e4] sm:$0xf]
    %v243 = vld [vmem:[#allocation5 + $0x428] sm:$0xff]
    %v244 = vld [vmem:[#allocation5 + $0x430] sm:$0xf]
    %v245 = vld [vmem:[#allocation5 + $0x474] sm:$0xff]
    %v246 = vld [vmem:[#allocation5 + $0x47c] sm:$0xf]
    %v247 = vld [vmem:[#allocation5 + $0xc] sm:$0xf]
    %v248 = vld [vmem:[#allocation5 + $0x58] sm:$0xf]
    %v249 = vld [vmem:[#allocation5 + $0xa4] sm:$0xf]
    %v250 = vld [vmem:[#allocation5 + $0xf0] sm:$0xf]
    %v251 = vld [vmem:[#allocation5 + $0x13c] sm:$0xf]
    %v252 = vld [vmem:[#allocation5 + $0x188] sm:$0xf]
    %v253 = vld [vmem:[#allocation5 + $0x1d4] sm:$0xf]
    %v254 = vld [vmem:[#allocation5 + $0x220] sm:$0xf]
    %v255 = vld [vmem:[#allocation5 + $0x26c] sm:$0xf]
    %v256 = vld [vmem:[#allocation5 + $0x2b8] sm:$0xf]
    %v257 = vld [vmem:[#allocation5 + $0x304] sm:$0xf]
    %v258 = vld [vmem:[#allocation5 + $0x350] sm:$0xf]
    %v259 = vld [vmem:[#allocation5 + $0x39c] sm:$0xf]
    %v260 = vld [vmem:[#allocation5 + $0x3e8] sm:$0xf]
    %v261 = vld [vmem:[#allocation5 + $0x434] sm:$0xf]
    %v262 = vld [vmem:[#allocation5 + $0x480] sm:$0xf]
    %v263 = vld [vmem:[#allocation5 + $0x10] sm:$0xff]
    %v264 = vld [vmem:[#allocation5 + $0x18] sm:$0xff]
    %v265 = vld [vmem:[#allocation5 + $0x5c] sm:$0xff]
    %v266 = vld [vmem:[#allocation5 + $0x64] sm:$0xff]
    %v267 = vld [vmem:[#allocation5 + $0xa8] sm:$0xff]
    %v268 = vld [vmem:[#allocation5 + $0xb0] sm:$0xff]
    %v269 = vld [vmem:[#allocation5 + $0xf4] sm:$0xff]
    %v270 = vld [vmem:[#allocation5 + $0xfc] sm:$0xff]
    %v271 = vld [vmem:[#allocation5 + $0x140] sm:$0xff]
    %v272 = vld [vmem:[#allocation5 + $0x148] sm:$0xff]
    %v273 = vld [vmem:[#allocation5 + $0x18c] sm:$0xff]
    %v274 = vld [vmem:[#allocation5 + $0x194] sm:$0xff]
    %v275 = vld [vmem:[#allocation5 + $0x1d8] sm:$0xff]
    %v276 = vld [vmem:[#allocation5 + $0x1e0] sm:$0xff]
    %v277 = vld [vmem:[#allocation5 + $0x224] sm:$0xff]
    %v278 = vld [vmem:[#allocation5 + $0x22c] sm:$0xff]
    %v279 = vld [vmem:[#allocation5 + $0x270] sm:$0xff]
    %v280 = vld [vmem:[#allocation5 + $0x278] sm:$0xff]
    %v281 = vld [vmem:[#allocation5 + $0x2bc] sm:$0xff]
    %v282 = vld [vmem:[#allocation5 + $0x2c4] sm:$0xff]
    %v283 = vld [vmem:[#allocation5 + $0x308] sm:$0xff]
    %v284 = vld [vmem:[#allocation5 + $0x310] sm:$0xff]
    %v285 = vld [vmem:[#allocation5 + $0x354] sm:$0xff]
    %v286 = vld [vmem:[#allocation5 + $0x35c] sm:$0xff]
    %v287 = vld [vmem:[#allocation5 + $0x3a0] sm:$0xff]
    %v288 = vld [vmem:[#allocation5 + $0x3a8] sm:$0xff]
    %v289 = vld [vmem:[#allocation5 + $0x3ec] sm:$0xff]
    %v290 = vld [vmem:[#allocation5 + $0x3f4] sm:$0xff]
    %v291 = vld [vmem:[#allocation5 + $0x438] sm:$0xff]
    %v292 = vld [vmem:[#allocation5 + $0x440] sm:$0xff]
    %v293 = vld [vmem:[#allocation5 + $0x484] sm:$0xff]
    %v294 = vld [vmem:[#allocation5 + $0x48c] sm:$0xff]
    %v295 = vld [vmem:[#allocation7] sm:$0xf]
    %v296 = vld [vmem:[#allocation7 + $0x4] sm:$0xf]
    %v297 = vld [vmem:[#allocation7 + $0x8] sm:$0xf]
    %v298 = vld [vmem:[#allocation7 + $0xc] sm:$0xf]
    %v299 = vld [vmem:[#allocation7 + $0x10] sm:$0xf]
    %v300 = vld [vmem:[#allocation7 + $0x14] sm:$0xf]
    %v301 = vld [vmem:[#allocation7 + $0x18] sm:$0xf]
    %v302 = vld [vmem:[#allocation7 + $0x1c] sm:$0xf]
    %v303 = vld [vmem:[#allocation7 + $0x20] sm:$0xf]
    %v304 = vld [vmem:[#allocation7 + $0x24] sm:$0xf]
    %v305 = vld [vmem:[#allocation7 + $0x28] sm:$0xf]
    %v306 = vld [vmem:[#allocation7 + $0x2c] sm:$0xf]
    %v307 = vld [vmem:[#allocation7 + $0x30] sm:$0xf]
    %v308 = vld [vmem:[#allocation7 + $0x34] sm:$0xf]
    %v309 = vld [vmem:[#allocation7 + $0x38] sm:$0xf]
    %v310 = vld [vmem:[#allocation7 + $0x3c] sm:$0xf]
    %v311 = vld [vmem:[#allocation7 + $0x40] sm:$0xf]
    %v312 = vld [vmem:[#allocation7 + $0x44] sm:$0xf]
    %v313 = vld [vmem:[#allocation7 + $0x48] sm:$0xf]
    %v314 = vld [vmem:[#allocation7 + $0x4c] sm:$0xf]
    %v315 = vld [vmem:[#allocation7 + $0x50] sm:$0xf]
    %v316 = vld [vmem:[#allocation7 + $0x54] sm:$0xf]
    %v317 = vld [vmem:[#allocation7 + $0x58] sm:$0xf]
    %v318 = vld [vmem:[#allocation7 + $0x5c] sm:$0xf]
    %v319 = vld [vmem:[#allocation7 + $0x60] sm:$0xf]
    %v320 = vld [vmem:[#allocation7 + $0x64] sm:$0xf]
    %v321 = vld [vmem:[#allocation7 + $0x68] sm:$0xf]
    %v322 = vld [vmem:[#allocation7 + $0x6c] sm:$0xf]
    %v323 = vld [vmem:[#allocation7 + $0x70] sm:$0xf]
    %v324 = vld [vmem:[#allocation7 + $0x74] sm:$0xf]
    %v325 = vld [vmem:[#allocation7 + $0x78] sm:$0xf]
    %v326 = vld [vmem:[#allocation7 + $0x7c] sm:$0xf]
    %v327 = vld [vmem:[#allocation7 + $0x80] sm:$0xf]
    %v328 = vld [vmem:[#allocation7 + $0x84] sm:$0xf]
    %v329 = vld [vmem:[#allocation7 + $0x88] sm:$0xf]
    %v330 = vld [vmem:[#allocation7 + $0x8c] sm:$0xf]
    %v331 = vld [vmem:[#allocation7 + $0x90] sm:$0xf]
    %v332 = vld [vmem:[#allocation7 + $0x94] sm:$0xf]
    %v333 = vld [vmem:[#allocation7 + $0x98] sm:$0xf]
    %v334 = vld [vmem:[#allocation7 + $0x9c] sm:$0xf]
    %v335 = vld [vmem:[#allocation7 + $0xa0] sm:$0xf]
    %v336 = vld [vmem:[#allocation7 + $0xa4] sm:$0xf]
    %v337 = vld [vmem:[#allocation7 + $0xa8] sm:$0xf]
    %v338 = vld [vmem:[#allocation7 + $0xac] sm:$0xf]
    %v339 = vld [vmem:[#allocation7 + $0xb0] sm:$0xf]
    %v340 = vld [vmem:[#allocation7 + $0xb4] sm:$0xf]
    %v341 = vld [vmem:[#allocation7 + $0xb8] sm:$0xf]
    %v342 = vld [vmem:[#allocation7 + $0xbc] sm:$0xf]
    %v343 = vld [vmem:[#allocation7 + $0xc0] sm:$0xf]
    %v344 = vld [vmem:[#allocation7 + $0xc4] sm:$0xf]
    %v345 = vld [vmem:[#allocation7 + $0xc8] sm:$0xf]
    %v346 = vld [vmem:[#allocation7 + $0xcc] sm:$0xf]
    %v347 = vld [vmem:[#allocation7 + $0xd0] sm:$0xf]
    %v348 = vld [vmem:[#allocation7 + $0xd4] sm:$0xf]
    %v349 = vld [vmem:[#allocation7 + $0xd8] sm:$0xf]
    %v350 = vld [vmem:[#allocation7 + $0xdc] sm:$0xf]
    %v351 = vld [vmem:[#allocation7 + $0xe0] sm:$0xf]
    %v352 = vld [vmem:[#allocation7 + $0xe4] sm:$0xf]
    %v353 = vld [vmem:[#allocation7 + $0xe8] sm:$0xf]
    %v354 = vld [vmem:[#allocation7 + $0xec] sm:$0xf]
    %v355 = vld [vmem:[#allocation7 + $0xf0] sm:$0xf]
    %v356 = vld [vmem:[#allocation7 + $0xf4] sm:$0xf]
    %v357 = vld [vmem:[#allocation7 + $0xf8] sm:$0xf]
    %v358 = vld [vmem:[#allocation7 + $0xfc] sm:$0xf]
    %359 = vadd.xlane.f32.xlu0 %v187
    %v360 = vpop.xlane.xlu0 %359
    %v361 = vrcp.pop 128.0
    %v362 = vmul.f32 128.0, %v361
    %v363 = vsub.f32 1.0, %v362
    %v364 = vmul.f32 %v361, %v363
    %v365 = vadd.f32 %v361, %v364
    %vm366 = vweird.f32 %v361
    %v367 = vsel %vm366, %v361, %v365
    %v368 = vmul.f32 %v360, %v367
    %v369 = vsub.f32 %v187, %v368
    %v370 = vmul.f32 %v369, %v369
    %371 = vadd.xlane.f32.xlu0 %v370
    %v372 = vpop.xlane.xlu0 %371
    %v373 = vmul.f32 %v372, %v367
    %v374 = vadd.f32 %v373, 1e-05
    %v375 = vrsqrt.pop %v374
    %v376 = vmul.f32 %v375, %v374
    %v377 = vmul.f32 %v376, %v375
    %v378 = vmul.f32 0.5, %v377
    %v379 = vsub.f32 1.5, %v378
    %v380 = vmul.f32 %v375, %v379
    %vm381 = vweird.f32 %v374
    %vm382 = vweird.f32 %v375
    %vm383 = vmor %vm381, %vm382
    %v384 = vsel %vm383, %v375, %v380
    %v385 = vmul.f32 %v369, %v384
    %v386 = vmul.f32 %v385, %v205
    %v387 = vadd.f32 %v386, %v206
    %v388 = vpack.c.bf16 %v387, %v387
    %v390 = vperm.slane %v208, 0
    %v391 = vperm.slane %v208, 1
    %v392 = vperm.slane %v208, 2
    %v428 = vunpack.c.l.b16 %v215
    %v429 = vunpack.c.h.b16 %v215
    %v430 = vunpack.c.l.b16 %v216
    %v431 = vunpack.c.l.b16 %v217
    %v432 = vunpack.c.h.b16 %v217
    %v433 = vunpack.c.l.b16 %v218
    %v434 = vunpack.c.l.b16 %v219
    %v435 = vunpack.c.h.b16 %v219
    %v436 = vunpack.c.l.b16 %v220
    %v437 = vunpack.c.l.b16 %v221
    %v438 = vunpack.c.h.b16 %v221
    %v439 = vunpack.c.l.b16 %v222
    %v440 = vunpack.c.l.b16 %v223
    %v441 = vunpack.c.h.b16 %v223
    %v442 = vunpack.c.l.b16 %v224
    %v443 = vunpack.c.l.b16 %v225
    %v444 = vunpack.c.h.b16 %v225
    %v445 = vunpack.c.l.b16 %v226
    %v446 = vunpack.c.l.b16 %v227
    %v447 = vunpack.c.h.b16 %v227
    %v448 = vunpack.c.l.b16 %v228
    %v449 = vunpack.c.l.b16 %v229
    %v450 = vunpack.c.h.b16 %v229
    %v451 = vunpack.c.l.b16 %v230
    %v452 = vunpack.c.l.b16 %v231
    %v453 = vunpack.c.h.b16 %v231
    %v454 = vunpack.c.l.b16 %v232
    %v455 = vunpack.c.l.b16 %v233
    %v456 = vunpack.c.h.b16 %v233
    %v457 = vunpack.c.l.b16 %v234
    %v458 = vunpack.c.l.b16 %v235
    %v459 = vunpack.c.h.b16 %v235
    %v460 = vunpack.c.l.b16 %v236
    %v461 = vunpack.c.l.b16 %v237
    %v462 = vunpack.c.h.b16 %v237
    %v463 = vunpack.c.l.b16 %v238
    %v464 = vunpack.c.l.b16 %v239
    %v465 = vunpack.c.h.b16 %v239
    %v466 = vunpack.c.l.b16 %v240
    %v467 = vunpack.c.l.b16 %v241
    %v468 = vunpack.c.h.b16 %v241
    %v469 = vunpack.c.l.b16 %v242
    %v470 = vunpack.c.l.b16 %v243
    %v471 = vunpack.c.h.b16 %v243
    %v472 = vunpack.c.l.b16 %v244
    %v473 = vunpack.c.l.b16 %v245
    %v474 = vunpack.c.h.b16 %v245
    %v475 = vunpack.c.l.b16 %v246
    %v476 = vpack.c.b16 %v431, %v428
    %v477 = vpack.c.b16 %v432, %v429
    %v478 = vpack.c.b16 %v433, %v430
    %v479 = vpack.c.b16 %v437, %v434
    %v480 = vpack.c.b16 %v438, %v435
    %v481 = vpack.c.b16 %v439, %v436
    %v482 = vpack.c.b16 %v443, %v440
    %v483 = vpack.c.b16 %v444, %v441
    %v484 = vpack.c.b16 %v445, %v442
    %v485 = vpack.c.b16 %v449, %v446
    %v486 = vpack.c.b16 %v450, %v447
    %v487 = vpack.c.b16 %v451, %v448
    %v488 = vpack.c.b16 %v455, %v452
    %v489 = vpack.c.b16 %v456, %v453
    %v490 = vpack.c.b16 %v457, %v454
    %v491 = vpack.c.b16 %v461, %v458
    %v492 = vpack.c.b16 %v462, %v459
    %v493 = vpack.c.b16 %v463, %v460
    %v494 = vpack.c.b16 %v467, %v464
    %v495 = vpack.c.b16 %v468, %v465
    %v496 = vpack.c.b16 %v469, %v466
    %v497 = vpack.c.b16 %v473, %v470
    %v498 = vpack.c.b16 %v474, %v471
    %v499 = vpack.c.b16 %v475, %v472
    %524 = vmatpush.bf16.msra.mxu0 %v497
    %525 = vmatpush.bf16.msra.mxu0 %v494
    %526 = vmatpush.bf16.msra.mxu0 %v491
    %527 = vmatpush.bf16.msra.mxu0 %v488
    %528 = vmatpush.bf16.msra.mxu0 %v485
    %529 = vmatpush.bf16.msra.mxu0 %v482
    %530 = vmatpush.bf16.msra.mxu0 %v479
    %531 = vmatpush.bf16.msra.mxu0 %v476
    %532 = vmatmul.bf16.gmra.mxu0 %v388
    %v533 = vpop.f32.mrf.mxu0
    %v534 = vadd.f32 %v390, %v533
    %v535 = vpop.f32.mrf.mxu0
    %536 = vdwg.mxu0
    %537 = vmatpush.bf16.msra.mxu0 %v498
    %538 = vmatpush.bf16.msra.mxu0 %v495
    %539 = vmatpush.bf16.msra.mxu0 %v492
    %540 = vmatpush.bf16.msra.mxu0 %v489
    %541 = vmatpush.bf16.msra.mxu0 %v486
    %542 = vmatpush.bf16.msra.mxu0 %v483
    %543 = vmatpush.bf16.msra.mxu0 %v480
    %544 = vmatpush.bf16.msra.mxu0 %v477
    %545 = vmatmul.bf16.gmra.mxu0 %v388
    %v546 = vpop.f32.mrf.mxu0
    %v547 = vadd.f32 %v391, %v546
    %v548 = vpop.f32.mrf.mxu0
    %549 = vdwg.mxu0
    %550 = vmatpush.bf16.msra.mxu0 %v499
    %551 = vmatpush.bf16.msra.mxu0 %v496
    %552 = vmatpush.bf16.msra.mxu0 %v493
    %553 = vmatpush.bf16.msra.mxu0 %v490
    %554 = vmatpush.bf16.msra.mxu0 %v487
    %555 = vmatpush.bf16.msra.mxu0 %v484
    %556 = vmatpush.bf16.msra.mxu0 %v481
    %557 = vmatpush.bf16.msra.mxu0 %v478
    %558 = vmatmul.bf16.gmra.mxu0 %v388
    %v559 = vpop.f32.mrf.mxu0
    %v560 = vadd.f32 %v392, %v559
    %v561 = vpop.f32.mrf.mxu0
    %562 = vdwg.mxu0
    %v563 = vrot.slane %v547, 7
    %v564 = vrot.slane %v560, 7
    %v565 = vmul.f32 %v534, %v547
    %v566 = vpack.c.bf16 %v565, %v565
    %v583 = vunpack.c.l.b16 %v101
    %v584 = vunpack.c.l.b16 %v102
    %v585 = vunpack.c.l.b16 %v103
    %v586 = vunpack.c.l.b16 %v104
    %v587 = vunpack.c.l.b16 %v105
    %v588 = vunpack.c.l.b16 %v106
    %v589 = vunpack.c.l.b16 %v107
    %v590 = vunpack.c.l.b16 %v108
    %v591 = vunpack.c.l.b16 %v109
    %v592 = vunpack.c.l.b16 %v110
    %v593 = vunpack.c.l.b16 %v111
    %v594 = vunpack.c.l.b16 %v112
    %v595 = vunpack.c.l.b16 %v113
    %v596 = vunpack.c.l.b16 %v114
    %v597 = vunpack.c.l.b16 %v115
    %v598 = vunpack.c.l.b16 %v116
    %v599 = vpack.c.b16 %v584, %v583
    %v600 = vpack.c.b16 %v586, %v585
    %v601 = vpack.c.b16 %v588, %v587
    %v602 = vpack.c.b16 %v590, %v589
    %v603 = vpack.c.b16 %v592, %v591
    %v604 = vpack.c.b16 %v594, %v593
    %v605 = vpack.c.b16 %v596, %v595
    %v606 = vpack.c.b16 %v598, %v597
    %615 = vmatpush.bf16.msra.mxu0 %v606
    %616 = vmatpush.bf16.msra.mxu0 %v605
    %617 = vmatpush.bf16.msra.mxu0 %v604
    %618 = vmatpush.bf16.msra.mxu0 %v603
    %619 = vmatpush.bf16.msra.mxu0 %v602
    %620 = vmatpush.bf16.msra.mxu0 %v601
    %621 = vmatpush.bf16.msra.mxu0 %v600
    %622 = vmatpush.bf16.msra.mxu0 %v599
    %623 = vmatmul.bf16.gmra.mxu0 %v566
    %v624 = vpop.f32.mrf.mxu0
    %v625 = vadd.f32 0.0, %v624
    %v626 = vpop.f32.mrf.mxu0
    %627 = vdwg.mxu0
    %v628 = vmul.f32 %v625, 0.17677669
    %v629 = vmul.f32 %v534, %v563
    %v630 = vpack.c.bf16 %v629, %v629
    %631 = vmatpush.bf16.msra.mxu0 %v606
    %632 = vmatpush.bf16.msra.mxu0 %v605
    %633 = vmatpush.bf16.msra.mxu0 %v604
    %634 = vmatpush.bf16.msra.mxu0 %v603
    %635 = vmatpush.bf16.msra.mxu0 %v602
    %636 = vmatpush.bf16.msra.mxu0 %v601
    %637 = vmatpush.bf16.msra.mxu0 %v600
    %638 = vmatpush.bf16.msra.mxu0 %v599
    %639 = vmatmul.bf16.gmra.mxu0 %v630
    %v640 = vpop.f32.mrf.mxu0
    %v641 = vadd.f32 0.0, %v640
    %v642 = vpop.f32.mrf.mxu0
    %643 = vdwg.mxu0
    %v644 = vmul.f32 %v641, 0.17677669
    %v645 = vmax.f32 %v628, %v644
    %v646 = vsub.f32 %v628, %v645
    %v647 = vmul.f32 %v646, 1.442695
    %v648 = vpow.pop %v647
    %v649 = vsub.f32 %v644, %v645
    %v650 = vmul.f32 %v649, 1.442695
    %v651 = vpow.pop %v650
    %v652 = vadd.f32 %v648, %v651
    %v653 = vrcp.pop %v652
    %v654 = vmul.f32 %v648, %v653
    %v655 = vsel %vm204, 1, 0
    %vm656 = vcmp.eq.s32.totalorder %v655, 1
    %v657 = vsel %vm656, %v654, 1.0
    %v658 = vmul.f32 %v651, %v653
    %v659 = vsel %vm656, %v658, 0.0
    %v660 = vpack.c.bf16 %v657, %v657
    %vm661 = vcmask 31744
    %v663 = vsel %vm661, %v660, 0
    %vm665 = vcmask 1041408
    %v667 = vsel %vm665, %v117, 0
    %669 = vmatpush.bf16.msra.mxu0 0
    %670 = vmatpush.bf16.msra.mxu0 0
    %671 = vmatpush.bf16.msra.mxu0 0
    %672 = vmatpush.bf16.msra.mxu0 0
    %673 = vmatpush.bf16.msra.mxu0 0
    %674 = vmatpush.bf16.msra.mxu0 0
    %675 = vmatpush.bf16.msra.mxu0 0
    %676 = vmatpush.bf16.msra.mxu0 %v667
    %677 = vmatmul.bf16.gmra.mxu0 %v663
    %v678 = vpop.f32.mrf.mxu0
    %v679 = vadd.f32 0.0, %v678
    %v680 = vpop.f32.mrf.mxu0
    %681 = vdwg.mxu0
    %v682 = vmul.f32 %v679, %v560
    %v683 = vpack.c.bf16 %v659, %v659
    %v685 = vsel %vm661, %v683, 0
    %687 = vmatpush.bf16.msra.mxu0 0
    %688 = vmatpush.bf16.msra.mxu0 0
    %689 = vmatpush.bf16.msra.mxu0 0
    %690 = vmatpush.bf16.msra.mxu0 0
    %691 = vmatpush.bf16.msra.mxu0 0
    %692 = vmatpush.bf16.msra.mxu0 0
    %693 = vmatpush.bf16.msra.mxu0 0
    %694 = vmatpush.bf16.msra.mxu0 %v667
    %695 = vmatmul.bf16.gmra.mxu0 %v685
    %v696 = vpop.f32.mrf.mxu0
    %v697 = vadd.f32 0.0, %v696
    %v698 = vpop.f32.mrf.mxu0
    %699 = vdwg.mxu0
    %v700 = vmul.f32 %v697, %v564
    %v701 = vadd.f32 %v682, %v700
    %v702 = vpack.c.bf16 %v701, %v701
    %v719 = vunpack.c.l.b16 %v247
    %v720 = vunpack.c.l.b16 %v248
    %v721 = vunpack.c.l.b16 %v249
    %v722 = vunpack.c.l.b16 %v250
    %v723 = vunpack.c.l.b16 %v251
    %v724 = vunpack.c.l.b16 %v252
    %v725 = vunpack.c.l.b16 %v253
    %v726 = vunpack.c.l.b16 %v254
    %v727 = vunpack.c.l.b16 %v255
    %v728 = vunpack.c.l.b16 %v256
    %v729 = vunpack.c.l.b16 %v257
    %v730 = vunpack.c.l.b16 %v258
    %v731 = vunpack.c.l.b16 %v259
    %v732 = vunpack.c.l.b16 %v260
    %v733 = vunpack.c.l.b16 %v261
    %v734 = vunpack.c.l.b16 %v262
    %v735 = vpack.c.b16 %v720, %v719
    %v736 = vpack.c.b16 %v722, %v721
    %v737 = vpack.c.b16 %v724, %v723
    %v738 = vpack.c.b16 %v726, %v725
    %v739 = vpack.c.b16 %v728, %v727
    %v740 = vpack.c.b16 %v730, %v729
    %v741 = vpack.c.b16 %v732, %v731
    %v742 = vpack.c.b16 %v734, %v733
    %751 = vmatpush.bf16.msra.mxu0 %v742
    %752 = vmatpush.bf16.msra.mxu0 %v741
    %753 = vmatpush.bf16.msra.mxu0 %v740
    %754 = vmatpush.bf16.msra.mxu0 %v739
    %755 = vmatpush.bf16.msra.mxu0 %v738
    %756 = vmatpush.bf16.msra.mxu0 %v737
    %757 = vmatpush.bf16.msra.mxu0 %v736
    %758 = vmatpush.bf16.msra.mxu0 %v735
    %759 = vmatmul.bf16.gmra.mxu0 %v702
    %v760 = vpop.f32.mrf.mxu0
    %v761 = vadd.f32 0.0, %v760
    %v762 = vpop.f32.mrf.mxu0
    %763 = vdwg.mxu0
    %v764 = vadd.f32 %v187, %v761
    %v765 = vadd.f32 %v764, %v209
    %766 = vadd.xlane.f32.xlu0 %v765
    %v767 = vpop.xlane.xlu0 %766
    %v768 = vmul.f32 %v767, %v367
    %v769 = vsub.f32 %v765, %v768
    %v770 = vmul.f32 %v769, %v769
    %771 = vadd.xlane.f32.xlu0 %v770
    %v772 = vpop.xlane.xlu0 %771
    %v773 = vmul.f32 %v772, %v367
    %v774 = vadd.f32 %v773, 1e-05
    %v775 = vrsqrt.pop %v774
    %v776 = vmul.f32 %v775, %v774
    %v777 = vmul.f32 %v776, %v775
    %v778 = vmul.f32 0.5, %v777
    %v779 = vsub.f32 1.5, %v778
    %v780 = vmul.f32 %v775, %v779
    %vm781 = vweird.f32 %v774
    %vm782 = vweird.f32 %v775
    %vm783 = vmor %vm781, %vm782
    %v784 = vsel %vm783, %v775, %v780
    %v785 = vmul.f32 %v769, %v784
    %v786 = vmul.f32 %v785, %v210
    %v787 = vadd.f32 %v786, %v211
    %v788 = vpack.c.bf16 %v787, %v787
    %v790 = vperm.slane %v213, 0
    %v791 = vperm.slane %v213, 1
    %v792 = vperm.slane %v213, 2
    %v793 = vperm.slane %v213, 3
    %v830 = vunpack.c.l.b16 %v263
    %v831 = vunpack.c.h.b16 %v263
    %v832 = vunpack.c.l.b16 %v264
    %v833 = vunpack.c.h.b16 %v264
    %v834 = vunpack.c.l.b16 %v265
    %v835 = vunpack.c.h.b16 %v265
    %v836 = vunpack.c.l.b16 %v266
    %v837 = vunpack.c.h.b16 %v266
    %v838 = vunpack.c.l.b16 %v267
    %v839 = vunpack.c.h.b16 %v267
    %v840 = vunpack.c.l.b16 %v268
    %v841 = vunpack.c.h.b16 %v268
    %v842 = vunpack.c.l.b16 %v269
    %v843 = vunpack.c.h.b16 %v269
    %v844 = vunpack.c.l.b16 %v270
    %v845 = vunpack.c.h.b16 %v270
    %v846 = vunpack.c.l.b16 %v271
    %v847 = vunpack.c.h.b16 %v271
    %v848 = vunpack.c.l.b16 %v272
    %v849 = vunpack.c.h.b16 %v272
    %v850 = vunpack.c.l.b16 %v273
    %v851 = vunpack.c.h.b16 %v273
    %v852 = vunpack.c.l.b16 %v274
    %v853 = vunpack.c.h.b16 %v274
    %v854 = vunpack.c.l.b16 %v275
    %v855 = vunpack.c.h.b16 %v275
    %v856 = vunpack.c.l.b16 %v276
    %v857 = vunpack.c.h.b16 %v276
    %v858 = vunpack.c.l.b16 %v277
    %v859 = vunpack.c.h.b16 %v277
    %v860 = vunpack.c.l.b16 %v278
    %v861 = vunpack.c.h.b16 %v278
    %v862 = vunpack.c.l.b16 %v279
    %v863 = vunpack.c.h.b16 %v279
    %v864 = vunpack.c.l.b16 %v280
    %v865 = vunpack.c.h.b16 %v280
    %v866 = vunpack.c.l.b16 %v281
    %v867 = vunpack.c.h.b16 %v281
    %v868 = vunpack.c.l.b16 %v282
    %v869 = vunpack.c.h.b16 %v282
    %v870 = vunpack.c.l.b16 %v283
    %v871 = vunpack.c.h.b16 %v283
    %v872 = vunpack.c.l.b16 %v284
    %v873 = vunpack.c.h.b16 %v284
    %v874 = vunpack.c.l.b16 %v285
    %v875 = vunpack.c.h.b16 %v285
    %v876 = vunpack.c.l.b16 %v286
    %v877 = vunpack.c.h.b16 %v286
    %v878 = vunpack.c.l.b16 %v287
    %v879 = vunpack.c.h.b16 %v287
    %v880 = vunpack.c.l.b16 %v288
    %v881 = vunpack.c.h.b16 %v288
    %v882 = vunpack.c.l.b16 %v289
    %v883 = vunpack.c.h.b16 %v289
    %v884 = vunpack.c.l.b16 %v290
    %v885 = vunpack.c.h.b16 %v290
    %v886 = vunpack.c.l.b16 %v291
    %v887 = vunpack.c.h.b16 %v291
    %v888 = vunpack.c.l.b16 %v292
    %v889 = vunpack.c.h.b16 %v292
    %v890 = vunpack.c.l.b16 %v293
    %v891 = vunpack.c.h.b16 %v293
    %v892 = vunpack.c.l.b16 %v294
    %v893 = vunpack.c.h.b16 %v294
    %v894 = vpack.c.b16 %v834, %v830
    %v895 = vpack.c.b16 %v835, %v831
    %v896 = vpack.c.b16 %v836, %v832
    %v897 = vpack.c.b16 %v837, %v833
    %v898 = vpack.c.b16 %v842, %v838
    %v899 = vpack.c.b16 %v843, %v839
    %v900 = vpack.c.b16 %v844, %v840
    %v901 = vpack.c.b16 %v845, %v841
    %v902 = vpack.c.b16 %v850, %v846
    %v903 = vpack.c.b16 %v851, %v847
    %v904 = vpack.c.b16 %v852, %v848
    %v905 = vpack.c.b16 %v853, %v849
    %v906 = vpack.c.b16 %v858, %v854
    %v907 = vpack.c.b16 %v859, %v855
    %v908 = vpack.c.b16 %v860, %v856
    %v909 = vpack.c.b16 %v861, %v857
    %v910 = vpack.c.b16 %v866, %v862
    %v911 = vpack.c.b16 %v867, %v863
    %v912 = vpack.c.b16 %v868, %v864
    %v913 = vpack.c.b16 %v869, %v865
    %v914 = vpack.c.b16 %v874, %v870
    %v915 = vpack.c.b16 %v875, %v871
    %v916 = vpack.c.b16 %v876, %v872
    %v917 = vpack.c.b16 %v877, %v873
    %v918 = vpack.c.b16 %v882, %v878
    %v919 = vpack.c.b16 %v883, %v879
    %v920 = vpack.c.b16 %v884, %v880
    %v921 = vpack.c.b16 %v885, %v881
    %v922 = vpack.c.b16 %v890, %v886
    %v923 = vpack.c.b16 %v891, %v887
    %v924 = vpack.c.b16 %v892, %v888
    %v925 = vpack.c.b16 %v893, %v889
    %958 = vmatpush.bf16.msra.mxu0 %v922
    %959 = vmatpush.bf16.msra.mxu0 %v918
    %960 = vmatpush.bf16.msra.mxu0 %v914
    %961 = vmatpush.bf16.msra.mxu0 %v910
    %962 = vmatpush.bf16.msra.mxu0 %v906
    %963 = vmatpush.bf16.msra.mxu0 %v902
    %964 = vmatpush.bf16.msra.mxu0 %v898
    %965 = vmatpush.bf16.msra.mxu0 %v894
    %966 = vmatmul.bf16.gmra.mxu0 %v788
    %v967 = vpop.f32.mrf.mxu0
    %v968 = vadd.f32 %v790, %v967
    %v969 = vpop.f32.mrf.mxu0
    %970 = vdwg.mxu0
    %971 = vmatpush.bf16.msra.mxu0 %v923
    %972 = vmatpush.bf16.msra.mxu0 %v919
    %973 = vmatpush.bf16.msra.mxu0 %v915
    %974 = vmatpush.bf16.msra.mxu0 %v911
    %975 = vmatpush.bf16.msra.mxu0 %v907
    %976 = vmatpush.bf16.msra.mxu0 %v903
    %977 = vmatpush.bf16.msra.mxu0 %v899
    %978 = vmatpush.bf16.msra.mxu0 %v895
    %979 = vmatmul.bf16.gmra.mxu0 %v788
    %v980 = vpop.f32.mrf.mxu0
    %v981 = vadd.f32 %v791, %v980
    %v982 = vpop.f32.mrf.mxu0
    %983 = vdwg.mxu0
    %984 = vmatpush.bf16.msra.mxu0 %v924
    %985 = vmatpush.bf16.msra.mxu0 %v920
    %986 = vmatpush.bf16.msra.mxu0 %v916
    %987 = vmatpush.bf16.msra.mxu0 %v912
    %988 = vmatpush.bf16.msra.mxu0 %v908
    %989 = vmatpush.bf16.msra.mxu0 %v904
    %990 = vmatpush.bf16.msra.mxu0 %v900
    %991 = vmatpush.bf16.msra.mxu0 %v896
    %992 = vmatmul.bf16.gmra.mxu0 %v788
    %v993 = vpop.f32.mrf.mxu0
    %v994 = vadd.f32 %v792, %v993
    %v995 = vpop.f32.mrf.mxu0
    %996 = vdwg.mxu0
    %997 = vmatpush.bf16.msra.mxu0 %v925
    %998 = vmatpush.bf16.msra.mxu0 %v921
    %999 = vmatpush.bf16.msra.mxu0 %v917
    %1000 = vmatpush.bf16.msra.mxu0 %v913
    %1001 = vmatpush.bf16.msra.mxu0 %v909
    %1002 = vmatpush.bf16.msra.mxu0 %v905
    %1003 = vmatpush.bf16.msra.mxu0 %v901
    %1004 = vmatpush.bf16.msra.mxu0 %v897
    %1005 = vmatmul.bf16.gmra.mxu0 %v788
    %v1006 = vpop.f32.mrf.mxu0
    %v1007 = vadd.f32 %v793, %v1006
    %v1008 = vpop.f32.mrf.mxu0
    %1009 = vdwg.mxu0
    %v1010 = vmul.f32 %v968, 0.5
    %v1011 = vmul.f32 %v981, 0.5
    %v1012 = vmul.f32 %v994, 0.5
    %v1013 = vmul.f32 %v1007, 0.5
    %v1014 = vmul.f32 %v968, 0.044715
    %v1015 = vmul.f32 %v981, 0.044715
    %v1016 = vmul.f32 %v994, 0.044715
    %v1017 = vmul.f32 %v1007, 0.044715
    %v1018 = vmul.f32 %v1014, %v968
    %v1019 = vmul.f32 %v1015, %v981
    %v1020 = vmul.f32 %v1016, %v994
    %v1021 = vmul.f32 %v1017, %v1007
    %v1022 = vmul.f32 %v1018, %v968
    %v1023 = vmul.f32 %v1019, %v981
    %v1024 = vmul.f32 %v1020, %v994
    %v1025 = vmul.f32 %v1021, %v1007
    %v1026 = vadd.f32 %v968, %v1022
    %v1027 = vadd.f32 %v981, %v1023
    %v1028 = vadd.f32 %v994, %v1024
    %v1029 = vadd.f32 %v1007, %v1025
    %v1030 = vmul.f32 %v1026, 0.7978846
    %v1031 = vmul.f32 %v1027, 0.7978846
    %v1032 = vmul.f32 %v1028, 0.7978846
    %v1033 = vmul.f32 %v1029, 0.7978846
    %v1034 = vtanh.pop %v1030
    %v1035 = vtanh.pop %v1031
    %v1036 = vtanh.pop %v1032
    %v1037 = vtanh.pop %v1033
    %v1038 = vadd.f32 %v1034, 1.0
    %v1039 = vadd.f32 %v1035, 1.0
    %v1040 = vadd.f32 %v1036, 1.0
    %v1041 = vadd.f32 %v1037, 1.0
    %v1042 = vmul.f32 %v1010, %v1038
    %v1043 = vmul.f32 %v1011, %v1039
    %v1044 = vmul.f32 %v1012, %v1040
    %v1045 = vmul.f32 %v1013, %v1041
    %v1046 = vpack.c.bf16 %v1042, %v1042
    %v1047 = vpack.c.bf16 %v1043, %v1043
    %v1048 = vpack.c.bf16 %v1044, %v1044
    %v1049 = vpack.c.bf16 %v1045, %v1045
    %v1114 = vunpack.c.l.b16 %v295
    %v1115 = vunpack.c.l.b16 %v296
    %v1116 = vunpack.c.l.b16 %v297
    %v1117 = vunpack.c.l.b16 %v298
    %v1118 = vunpack.c.l.b16 %v299
    %v1119 = vunpack.c.l.b16 %v300
    %v1120 = vunpack.c.l.b16 %v301
    %v1121 = vunpack.c.l.b16 %v302
    %v1122 = vunpack.c.l.b16 %v303
    %v1123 = vunpack.c.l.b16 %v304
    %v1124 = vunpack.c.l.b16 %v305
    %v1125 = vunpack.c.l.b16 %v306
    %v1126 = vunpack.c.l.b16 %v307
    %v1127 = vunpack.c.l.b16 %v308
    %v1128 = vunpack.c.l.b16 %v309
    %v1129 = vunpack.c.l.b16 %v310
    %v1130 = vunpack.c.l.b16 %v311
    %v1131 = vunpack.c.l.b16 %v312
    %v1132 = vunpack.c.l.b16 %v313
    %v1133 = vunpack.c.l.b16 %v314
    %v1134 = vunpack.c.l.b16 %v315
    %v1135 = vunpack.c.l.b16 %v316
    %v1136 = vunpack.c.l.b16 %v317
    %v1137 = vunpack.c.l.b16 %v318
    %v1138 = vunpack.c.l.b16 %v319
    %v1139 = vunpack.c.l.b16 %v320
    %v1140 = vunpack.c.l.b16 %v321
    %v1141 = vunpack.c.l.b16 %v322
    %v1142 = vunpack.c.l.b16 %v323
    %v1143 = vunpack.c.l.b16 %v324
    %v1144 = vunpack.c.l.b16 %v325
    %v1145 = vunpack.c.l.b16 %v326
    %v1146 = vunpack.c.l.b16 %v327
    %v1147 = vunpack.c.l.b16 %v328
    %v1148 = vunpack.c.l.b16 %v329
    %v1149 = vunpack.c.l.b16 %v330
    %v1150 = vunpack.c.l.b16 %v331
    %v1151 = vunpack.c.l.b16 %v332
    %v1152 = vunpack.c.l.b16 %v333
    %v1153 = vunpack.c.l.b16 %v334
    %v1154 = vunpack.c.l.b16 %v335
    %v1155 = vunpack.c.l.b16 %v336
    %v1156 = vunpack.c.l.b16 %v337
    %v1157 = vunpack.c.l.b16 %v338
    %v1158 = vunpack.c.l.b16 %v339
    %v1159 = vunpack.c.l.b16 %v340
    %v1160 = vunpack.c.l.b16 %v341
    %v1161 = vunpack.c.l.b16 %v342
    %v1162 = vunpack.c.l.b16 %v343
    %v1163 = vunpack.c.l.b16 %v344
    %v1164 = vunpack.c.l.b16 %v345
    %v1165 = vunpack.c.l.b16 %v346
    %v1166 = vunpack.c.l.b16 %v347
    %v1167 = vunpack.c.l.b16 %v348
    %v1168 = vunpack.c.l.b16 %v349
    %v1169 = vunpack.c.l.b16 %v350
    %v1170 = vunpack.c.l.b16 %v351
    %v1171 = vunpack.c.l.b16 %v352
    %v1172 = vunpack.c.l.b16 %v353
    %v1173 = vunpack.c.l.b16 %v354
    %v1174 = vunpack.c.l.b16 %v355
    %v1175 = vunpack.c.l.b16 %v356
    %v1176 = vunpack.c.l.b16 %v357
    %v1177 = vunpack.c.l.b16 %v358
    %v1178 = vpack.c.b16 %v1115, %v1114
    %v1179 = vpack.c.b16 %v1117, %v1116
    %v1180 = vpack.c.b16 %v1119, %v1118
    %v1181 = vpack.c.b16 %v1121, %v1120
    %v1182 = vpack.c.b16 %v1123, %v1122
    %v1183 = vpack.c.b16 %v1125, %v1124
    %v1184 = vpack.c.b16 %v1127, %v1126
    %v1185 = vpack.c.b16 %v1129, %v1128
    %v1186 = vpack.c.b16 %v1131, %v1130
    %v1187 = vpack.c.b16 %v1133, %v1132
    %v1188 = vpack.c.b16 %v1135, %v1134
    %v1189 = vpack.c.b16 %v1137, %v1136
    %v1190 = vpack.c.b16 %v1139, %v1138
    %v1191 = vpack.c.b16 %v1141, %v1140
    %v1192 = vpack.c.b16 %v1143, %v1142
    %v1193 = vpack.c.b16 %v1145, %v1144
    %v1194 = vpack.c.b16 %v1147, %v1146
    %v1195 = vpack.c.b16 %v1149, %v1148
    %v1196 = vpack.c.b16 %v1151, %v1150
    %v1197 = vpack.c.b16 %v1153, %v1152
    %v1198 = vpack.c.b16 %v1155, %v1154
    %v1199 = vpack.c.b16 %v1157, %v1156
    %v1200 = vpack.c.b16 %v1159, %v1158
    %v1201 = vpack.c.b16 %v1161, %v1160
    %v1202 = vpack.c.b16 %v1163, %v1162
    %v1203 = vpack.c.b16 %v1165, %v1164
    %v1204 = vpack.c.b16 %v1167, %v1166
    %v1205 = vpack.c.b16 %v1169, %v1168
    %v1206 = vpack.c.b16 %v1171, %v1170
    %v1207 = vpack.c.b16 %v1173, %v1172
    %v1208 = vpack.c.b16 %v1175, %v1174
    %v1209 = vpack.c.b16 %v1177, %v1176
    %1242 = vmatpush.bf16.msra.mxu0 %v1185
    %1243 = vmatpush.bf16.msra.mxu0 %v1184
    %1244 = vmatpush.bf16.msra.mxu0 %v1183
    %1245 = vmatpush.bf16.msra.mxu0 %v1182
    %1246 = vmatpush.bf16.msra.mxu0 %v1181
    %1247 = vmatpush.bf16.msra.mxu0 %v1180
    %1248 = vmatpush.bf16.msra.mxu0 %v1179
    %1249 = vmatpush.bf16.msra.mxu0 %v1178
    %1250 = vmatmul.bf16.gmra.mxu0 %v1046
    %v1251 = vpop.f32.mrf.mxu0
    %v1252 = vadd.f32 0.0, %v1251
    %v1253 = vpop.f32.mrf.mxu0
    %1254 = vdwg.mxu0
    %1255 = vmatpush.bf16.msra.mxu0 %v1193
    %1256 = vmatpush.bf16.msra.mxu0 %v1192
    %1257 = vmatpush.bf16.msra.mxu0 %v1191
    %1258 = vmatpush.bf16.msra.mxu0 %v1190
    %1259 = vmatpush.bf16.msra.mxu0 %v1189
    %1260 = vmatpush.bf16.msra.mxu0 %v1188
    %1261 = vmatpush.bf16.msra.mxu0 %v1187
    %1262 = vmatpush.bf16.msra.mxu0 %v1186
    %1263 = vmatmul.bf16.gmra.mxu0 %v1047
    %v1264 = vpop.f32.mrf.mxu0
    %v1265 = vadd.f32 %v1252, %v1264
    %v1266 = vpop.f32.mrf.mxu0
    %1267 = vdwg.mxu0
    %1268 = vmatpush.bf16.msra.mxu0 %v1201
    %1269 = vmatpush.bf16.msra.mxu0 %v1200
    %1270 = vmatpush.bf16.msra.mxu0 %v1199
    %1271 = vmatpush.bf16.msra.mxu0 %v1198
    %1272 = vmatpush.bf16.msra.mxu0 %v1197
    %1273 = vmatpush.bf16.msra.mxu0 %v1196
    %1274 = vmatpush.bf16.msra.mxu0 %v1195
    %1275 = vmatpush.bf16.msra.mxu0 %v1194
    %1276 = vmatmul.bf16.gmra.mxu0 %v1048
    %v1277 = vpop.f32.mrf.mxu0
    %v1278 = vadd.f32 %v1265, %v1277
    %v1279 = vpop.f32.mrf.mxu0
    %1280 = vdwg.mxu0
    %1281 = vmatpush.bf16.msra.mxu0 %v1209
    %1282 = vmatpush.bf16.msra.mxu0 %v1208
    %1283 = vmatpush.bf16.msra.mxu0 %v1207
    %1284 = vmatpush.bf16.msra.mxu0 %v1206
    %1285 = vmatpush.bf16.msra.mxu0 %v1205
    %1286 = vmatpush.bf16.msra.mxu0 %v1204
    %1287 = vmatpush.bf16.msra.mxu0 %v1203
    %1288 = vmatpush.bf16.msra.mxu0 %v1202
    %1289 = vmatmul.bf16.gmra.mxu0 %v1049
    %v1290 = vpop.f32.mrf.mxu0
    %v1291 = vadd.f32 %v1278, %v1290
    %v1292 = vpop.f32.mrf.mxu0
    %1293 = vdwg.mxu0
    %v1294 = vadd.f32 %v765, %v1291
    %v1295 = vadd.f32 %v1294, %v214
    %v1296 = vld [vmem:[#allocation2 + $0x20] ss:$0 sm:$0xff]
    %v1297 = vld [vmem:[#allocation2 + $0x21] ss:$0 sm:$0xff]
    %s1298 = scalar_lea.vmem [#allocation2], 34
    %v1299 = vld [vmem:[%s1298] ss:$8 sm:$0x7]
    %v1300 = vld [vmem:[#allocation2 + $0x23] ss:$0 sm:$0xff]
    %v1301 = vld [vmem:[#allocation2 + $0x24] ss:$0 sm:$0xff]
    %v1302 = vld [vmem:[#allocation2 + $0x25] ss:$0 sm:$0xff]
    %s1303 = scalar_lea.vmem [#allocation2], 38
    %v1304 = vld [vmem:[%s1303] ss:$8 sm:$0xf]
    %v1305 = vld [vmem:[#allocation2 + $0x27] ss:$0 sm:$0xff]
    %v1306 = vld [vmem:[#allocation5 + $0x20] sm:$0xff]
    %v1307 = vld [vmem:[#allocation5 + $0x28] sm:$0xf]
    %v1308 = vld [vmem:[#allocation5 + $0x6c] sm:$0xff]
    %v1309 = vld [vmem:[#allocation5 + $0x74] sm:$0xf]
    %v1310 = vld [vmem:[#allocation5 + $0xb8] sm:$0xff]
    %v1311 = vld [vmem:[#allocation5 + $0xc0] sm:$0xf]
    %v1312 = vld [vmem:[#allocation5 + $0x104] sm:$0xff]
    %v1313 = vld [vmem:[#allocation5 + $0x10c] sm:$0xf]
    %v1314 = vld [vmem:[#allocation5 + $0x150] sm:$0xff]
    %v1315 = vld [vmem:[#allocation5 + $0x158] sm:$0xf]
    %v1316 = vld [vmem:[#allocation5 + $0x19c] sm:$0xff]
    %v1317 = vld [vmem:[#allocation5 + $0x1a4] sm:$0xf]
    %v1318 = vld [vmem:[#allocation5 + $0x1e8] sm:$0xff]
    %v1319 = vld [vmem:[#allocation5 + $0x1f0] sm:$0xf]
    %v1320 = vld [vmem:[#allocation5 + $0x234] sm:$0xff]
    %v1321 = vld [vmem:[#allocation5 + $0x23c] sm:$0xf]
    %v1322 = vld [vmem:[#allocation5 + $0x280] sm:$0xff]
    %v1323 = vld [vmem:[#allocation5 + $0x288] sm:$0xf]
    %v1324 = vld [vmem:[#allocation5 + $0x2cc] sm:$0xff]
    %v1325 = vld [vmem:[#allocation5 + $0x2d4] sm:$0xf]
    %v1326 = vld [vmem:[#allocation5 + $0x318] sm:$0xff]
    %v1327 = vld [vmem:[#allocation5 + $0x320] sm:$0xf]
    %v1328 = vld [vmem:[#allocation5 + $0x364] sm:$0xff]
    %v1329 = vld [vmem:[#allocation5 + $0x36c] sm:$0xf]
    %v1330 = vld [vmem:[#allocation5 + $0x3b0] sm:$0xff]
    %v1331 = vld [vmem:[#allocation5 + $0x3b8] sm:$0xf]
    %v1332 = vld [vmem:[#allocation5 + $0x3fc] sm:$0xff]
    %v1333 = vld [vmem:[#allocation5 + $0x404] sm:$0xf]
    %v1334 = vld [vmem:[#allocation5 + $0x448] sm:$0xff]
    %v1335 = vld [vmem:[#allocation5 + $0x450] sm:$0xf]
    %v1336 = vld [vmem:[#allocation5 + $0x494] sm:$0xff]
    %v1337 = vld [vmem:[#allocation5 + $0x49c] sm:$0xf]
    %v1338 = vld [vmem:[#allocation5 + $0x2c] sm:$0xf]
    %v1339 = vld [vmem:[#allocation5 + $0x78] sm:$0xf]
    %v1340 = vld [vmem:[#allocation5 + $0xc4] sm:$0xf]
    %v1341 = vld [vmem:[#allocation5 + $0x110] sm:$0xf]
    %v1342 = vld [vmem:[#allocation5 + $0x15c] sm:$0xf]
    %v1343 = vld [vmem:[#allocation5 + $0x1a8] sm:$0xf]
    %v1344 = vld [vmem:[#allocation5 + $0x1f4] sm:$0xf]
    %v1345 = vld [vmem:[#allocation5 + $0x240] sm:$0xf]
    %v1346 = vld [vmem:[#allocation5 + $0x28c] sm:$0xf]
    %v1347 = vld [vmem:[#allocation5 + $0x2d8] sm:$0xf]
    %v1348 = vld [vmem:[#allocation5 + $0x324] sm:$0xf]
    %v1349 = vld [vmem:[#allocation5 + $0x370] sm:$0xf]
    %v1350 = vld [vmem:[#allocation5 + $0x3bc] sm:$0xf]
    %v1351 = vld [vmem:[#allocation5 + $0x408] sm:$0xf]
    %v1352 = vld [vmem:[#allocation5 + $0x454] sm:$0xf]
    %v1353 = vld [vmem:[#allocation5 + $0x4a0] sm:$0xf]
    %v1354 = vld [vmem:[#allocation5 + $0x30] sm:$0xff]
    %v1355 = vld [vmem:[#allocation5 + $0x38] sm:$0xff]
    %v1356 = vld [vmem:[#allocation5 + $0x7c] sm:$0xff]
    %v1357 = vld [vmem:[#allocation5 + $0x84] sm:$0xff]
    %v1358 = vld [vmem:[#allocation5 + $0xc8] sm:$0xff]
    %v1359 = vld [vmem:[#allocation5 + $0xd0] sm:$0xff]
    %v1360 = vld [vmem:[#allocation5 + $0x114] sm:$0xff]
    %v1361 = vld [vmem:[#allocation5 + $0x11c] sm:$0xff]
    %v1362 = vld [vmem:[#allocation5 + $0x160] sm:$0xff]
    %v1363 = vld [vmem:[#allocation5 + $0x168] sm:$0xff]
    %v1364 = vld [vmem:[#allocation5 + $0x1ac] sm:$0xff]
    %v1365 = vld [vmem:[#allocation5 + $0x1b4] sm:$0xff]
    %v1366 = vld [vmem:[#allocation5 + $0x1f8] sm:$0xff]
    %v1367 = vld [vmem:[#allocation5 + $0x200] sm:$0xff]
    %v1368 = vld [vmem:[#allocation5 + $0x244] sm:$0xff]
    %v1369 = vld [vmem:[#allocation5 + $0x24c] sm:$0xff]
    %v1370 = vld [vmem:[#allocation5 + $0x290] sm:$0xff]
    %v1371 = vld [vmem:[#allocation5 + $0x298] sm:$0xff]
    %v1372 = vld [vmem:[#allocation5 + $0x2dc] sm:$0xff]
    %v1373 = vld [vmem:[#allocation5 + $0x2e4] sm:$0xff]
    %v1374 = vld [vmem:[#allocation5 + $0x328] sm:$0xff]
    %v1375 = vld [vmem:[#allocation5 + $0x330] sm:$0xff]
    %v1376 = vld [vmem:[#allocation5 + $0x374] sm:$0xff]
    %v1377 = vld [vmem:[#allocation5 + $0x37c] sm:$0xff]
    %v1378 = vld [vmem:[#allocation5 + $0x3c0] sm:$0xff]
    %v1379 = vld [vmem:[#allocation5 + $0x3c8] sm:$0xff]
    %v1380 = vld [vmem:[#allocation5 + $0x40c] sm:$0xff]
    %v1381 = vld [vmem:[#allocation5 + $0x414] sm:$0xff]
    %v1382 = vld [vmem:[#allocation5 + $0x458] sm:$0xff]
    %v1383 = vld [vmem:[#allocation5 + $0x460] sm:$0xff]
    %v1384 = vld [vmem:[#allocation5 + $0x4a4] sm:$0xff]
    %v1385 = vld [vmem:[#allocation5 + $0x4ac] sm:$0xff]
    %v1386 = vld [vmem:[#allocation7 + $0x100] sm:$0xf]
    %v1387 = vld [vmem:[#allocation7 + $0x104] sm:$0xf]
    %v1388 = vld [vmem:[#allocation7 + $0x108] sm:$0xf]
    %v1389 = vld [vmem:[#allocation7 + $0x10c] sm:$0xf]
    %v1390 = vld [vmem:[#allocation7 + $0x110] sm:$0xf]
    %v1391 = vld [vmem:[#allocation7 + $0x114] sm:$0xf]
    %v1392 = vld [vmem:[#allocation7 + $0x118] sm:$0xf]
    %v1393 = vld [vmem:[#allocation7 + $0x11c] sm:$0xf]
    %v1394 = vld [vmem:[#allocation7 + $0x120] sm:$0xf]
    %v1395 = vld [vmem:[#allocation7 + $0x124] sm:$0xf]
    %v1396 = vld [vmem:[#allocation7 + $0x128] sm:$0xf]
    %v1397 = vld [vmem:[#allocation7 + $0x12c] sm:$0xf]
    %v1398 = vld [vmem:[#allocation7 + $0x130] sm:$0xf]
    %v1399 = vld [vmem:[#allocation7 + $0x134] sm:$0xf]
    %v1400 = vld [vmem:[#allocation7 + $0x138] sm:$0xf]
    %v1401 = vld [vmem:[#allocation7 + $0x13c] sm:$0xf]
    %v1402 = vld [vmem:[#allocation7 + $0x140] sm:$0xf]
    %v1403 = vld [vmem:[#allocation7 + $0x144] sm:$0xf]
    %v1404 = vld [vmem:[#allocation7 + $0x148] sm:$0xf]
    %v1405 = vld [vmem:[#allocation7 + $0x14c] sm:$0xf]
    %v1406 = vld [vmem:[#allocation7 + $0x150] sm:$0xf]
    %v1407 = vld [vmem:[#allocation7 + $0x154] sm:$0xf]
    %v1408 = vld [vmem:[#allocation7 + $0x158] sm:$0xf]
    %v1409 = vld [vmem:[#allocation7 + $0x15c] sm:$0xf]
    %v1410 = vld [vmem:[#allocation7 + $0x160] sm:$0xf]
    %v1411 = vld [vmem:[#allocation7 + $0x164] sm:$0xf]
    %v1412 = vld [vmem:[#allocation7 + $0x168] sm:$0xf]
    %v1413 = vld [vmem:[#allocation7 + $0x16c] sm:$0xf]
    %v1414 = vld [vmem:[#allocation7 + $0x170] sm:$0xf]
    %v1415 = vld [vmem:[#allocation7 + $0x174] sm:$0xf]
    %v1416 = vld [vmem:[#allocation7 + $0x178] sm:$0xf]
    %v1417 = vld [vmem:[#allocation7 + $0x17c] sm:$0xf]
    %v1418 = vld [vmem:[#allocation7 + $0x180] sm:$0xf]
    %v1419 = vld [vmem:[#allocation7 + $0x184] sm:$0xf]
    %v1420 = vld [vmem:[#allocation7 + $0x188] sm:$0xf]
    %v1421 = vld [vmem:[#allocation7 + $0x18c] sm:$0xf]
    %v1422 = vld [vmem:[#allocation7 + $0x190] sm:$0xf]
    %v1423 = vld [vmem:[#allocation7 + $0x194] sm:$0xf]
    %v1424 = vld [vmem:[#allocation7 + $0x198] sm:$0xf]
    %v1425 = vld [vmem:[#allocation7 + $0x19c] sm:$0xf]
    %v1426 = vld [vmem:[#allocation7 + $0x1a0] sm:$0xf]
    %v1427 = vld [vmem:[#allocation7 + $0x1a4] sm:$0xf]
    %v1428 = vld [vmem:[#allocation7 + $0x1a8] sm:$0xf]
    %v1429 = vld [vmem:[#allocation7 + $0x1ac] sm:$0xf]
    %v1430 = vld [vmem:[#allocation7 + $0x1b0] sm:$0xf]
    %v1431 = vld [vmem:[#allocation7 + $0x1b4] sm:$0xf]
    %v1432 = vld [vmem:[#allocation7 + $0x1b8] sm:$0xf]
    %v1433 = vld [vmem:[#allocation7 + $0x1bc] sm:$0xf]
    %v1434 = vld [vmem:[#allocation7 + $0x1c0] sm:$0xf]
    %v1435 = vld [vmem:[#allocation7 + $0x1c4] sm:$0xf]
    %v1436 = vld [vmem:[#allocation7 + $0x1c8] sm:$0xf]
    %v1437 = vld [vmem:[#allocation7 + $0x1cc] sm:$0xf]
    %v1438 = vld [vmem:[#allocation7 + $0x1d0] sm:$0xf]
    %v1439 = vld [vmem:[#allocation7 + $0x1d4] sm:$0xf]
    %v1440 = vld [vmem:[#allocation7 + $0x1d8] sm:$0xf]
    %v1441 = vld [vmem:[#allocation7 + $0x1dc] sm:$0xf]
    %v1442 = vld [vmem:[#allocation7 + $0x1e0] sm:$0xf]
    %v1443 = vld [vmem:[#allocation7 + $0x1e4] sm:$0xf]
    %v1444 = vld [vmem:[#allocation7 + $0x1e8] sm:$0xf]
    %v1445 = vld [vmem:[#allocation7 + $0x1ec] sm:$0xf]
    %v1446 = vld [vmem:[#allocation7 + $0x1f0] sm:$0xf]
    %v1447 = vld [vmem:[#allocation7 + $0x1f4] sm:$0xf]
    %v1448 = vld [vmem:[#allocation7 + $0x1f8] sm:$0xf]
    %v1449 = vld [vmem:[#allocation7 + $0x1fc] sm:$0xf]
    %1450 = vadd.xlane.f32.xlu0 %v1295
    %v1451 = vpop.xlane.xlu0 %1450
    %v1452 = vmul.f32 %v1451, %v367
    %v1453 = vsub.f32 %v1295, %v1452
    %v1454 = vmul.f32 %v1453, %v1453
    %1455 = vadd.xlane.f32.xlu0 %v1454
    %v1456 = vpop.xlane.xlu0 %1455
    %v1457 = vmul.f32 %v1456, %v367
    %v1458 = vadd.f32 %v1457, 1e-05
    %v1459 = vrsqrt.pop %v1458
    %v1460 = vmul.f32 %v1459, %v1458
    %v1461 = vmul.f32 %v1460, %v1459
    %v1462 = vmul.f32 0.5, %v1461
    %v1463 = vsub.f32 1.5, %v1462
    %v1464 = vmul.f32 %v1459, %v1463
    %vm1465 = vweird.f32 %v1458
    %vm1466 = vweird.f32 %v1459
    %vm1467 = vmor %vm1465, %vm1466
    %v1468 = vsel %vm1467, %v1459, %v1464
    %v1469 = vmul.f32 %v1453, %v1468
    %v1470 = vmul.f32 %v1469, %v1296
    %v1471 = vadd.f32 %v1470, %v1297
    %v1472 = vpack.c.bf16 %v1471, %v1471
    %v1474 = vperm.slane %v1299, 0
    %v1475 = vperm.slane %v1299, 1
    %v1476 = vperm.slane %v1299, 2
    %v1512 = vunpack.c.l.b16 %v1306
    %v1513 = vunpack.c.h.b16 %v1306
    %v1514 = vunpack.c.l.b16 %v1307
    %v1515 = vunpack.c.l.b16 %v1308
    %v1516 = vunpack.c.h.b16 %v1308
    %v1517 = vunpack.c.l.b16 %v1309
    %v1518 = vunpack.c.l.b16 %v1310
    %v1519 = vunpack.c.h.b16 %v1310
    %v1520 = vunpack.c.l.b16 %v1311
    %v1521 = vunpack.c.l.b16 %v1312
    %v1522 = vunpack.c.h.b16 %v1312
    %v1523 = vunpack.c.l.b16 %v1313
    %v1524 = vunpack.c.l.b16 %v1314
    %v1525 = vunpack.c.h.b16 %v1314
    %v1526 = vunpack.c.l.b16 %v1315
    %v1527 = vunpack.c.l.b16 %v1316
    %v1528 = vunpack.c.h.b16 %v1316
    %v1529 = vunpack.c.l.b16 %v1317
    %v1530 = vunpack.c.l.b16 %v1318
    %v1531 = vunpack.c.h.b16 %v1318
    %v1532 = vunpack.c.l.b16 %v1319
    %v1533 = vunpack.c.l.b16 %v1320
    %v1534 = vunpack.c.h.b16 %v1320
    %v1535 = vunpack.c.l.b16 %v1321
    %v1536 = vunpack.c.l.b16 %v1322
    %v1537 = vunpack.c.h.b16 %v1322
    %v1538 = vunpack.c.l.b16 %v1323
    %v1539 = vunpack.c.l.b16 %v1324
    %v1540 = vunpack.c.h.b16 %v1324
    %v1541 = vunpack.c.l.b16 %v1325
    %v1542 = vunpack.c.l.b16 %v1326
    %v1543 = vunpack.c.h.b16 %v1326
    %v1544 = vunpack.c.l.b16 %v1327
    %v1545 = vunpack.c.l.b16 %v1328
    %v1546 = vunpack.c.h.b16 %v1328
    %v1547 = vunpack.c.l.b16 %v1329
    %v1548 = vunpack.c.l.b16 %v1330
    %v1549 = vunpack.c.h.b16 %v1330
    %v1550 = vunpack.c.l.b16 %v1331
    %v1551 = vunpack.c.l.b16 %v1332
    %v1552 = vunpack.c.h.b16 %v1332
    %v1553 = vunpack.c.l.b16 %v1333
    %v1554 = vunpack.c.l.b16 %v1334
    %v1555 = vunpack.c.h.b16 %v1334
    %v1556 = vunpack.c.l.b16 %v1335
    %v1557 = vunpack.c.l.b16 %v1336
    %v1558 = vunpack.c.h.b16 %v1336
    %v1559 = vunpack.c.l.b16 %v1337
    %v1560 = vpack.c.b16 %v1515, %v1512
    %v1561 = vpack.c.b16 %v1516, %v1513
    %v1562 = vpack.c.b16 %v1517, %v1514
    %v1563 = vpack.c.b16 %v1521, %v1518
    %v1564 = vpack.c.b16 %v1522, %v1519
    %v1565 = vpack.c.b16 %v1523, %v1520
    %v1566 = vpack.c.b16 %v1527, %v1524
    %v1567 = vpack.c.b16 %v1528, %v1525
    %v1568 = vpack.c.b16 %v1529, %v1526
    %v1569 = vpack.c.b16 %v1533, %v1530
    %v1570 = vpack.c.b16 %v1534, %v1531
    %v1571 = vpack.c.b16 %v1535, %v1532
    %v1572 = vpack.c.b16 %v1539, %v1536
    %v1573 = vpack.c.b16 %v1540, %v1537
    %v1574 = vpack.c.b16 %v1541, %v1538
    %v1575 = vpack.c.b16 %v1545, %v1542
    %v1576 = vpack.c.b16 %v1546, %v1543
    %v1577 = vpack.c.b16 %v1547, %v1544
    %v1578 = vpack.c.b16 %v1551, %v1548
    %v1579 = vpack.c.b16 %v1552, %v1549
    %v1580 = vpack.c.b16 %v1553, %v1550
    %v1581 = vpack.c.b16 %v1557, %v1554
    %v1582 = vpack.c.b16 %v1558, %v1555
    %v1583 = vpack.c.b16 %v1559, %v1556
    %1608 = vmatpush.bf16.msra.mxu0 %v1581
    %1609 = vmatpush.bf16.msra.mxu0 %v1578
    %1610 = vmatpush.bf16.msra.mxu0 %v1575
    %1611 = vmatpush.bf16.msra.mxu0 %v1572
    %1612 = vmatpush.bf16.msra.mxu0 %v1569
    %1613 = vmatpush.bf16.msra.mxu0 %v1566
    %1614 = vmatpush.bf16.msra.mxu0 %v1563
    %1615 = vmatpush.bf16.msra.mxu0 %v1560
    %1616 = vmatmul.bf16.gmra.mxu0 %v1472
    %v1617 = vpop.f32.mrf.mxu0
    %v1618 = vadd.f32 %v1474, %v1617
    %v1619 = vpop.f32.mrf.mxu0
    %1620 = vdwg.mxu0
    %1621 = vmatpush.bf16.msra.mxu0 %v1582
    %1622 = vmatpush.bf16.msra.mxu0 %v1579
    %1623 = vmatpush.bf16.msra.mxu0 %v1576
    %1624 = vmatpush.bf16.msra.mxu0 %v1573
    %1625 = vmatpush.bf16.msra.mxu0 %v1570
    %1626 = vmatpush.bf16.msra.mxu0 %v1567
    %1627 = vmatpush.bf16.msra.mxu0 %v1564
    %1628 = vmatpush.bf16.msra.mxu0 %v1561
    %1629 = vmatmul.bf16.gmra.mxu0 %v1472
    %v1630 = vpop.f32.mrf.mxu0
    %v1631 = vadd.f32 %v1475, %v1630
    %v1632 = vpop.f32.mrf.mxu0
    %1633 = vdwg.mxu0
    %1634 = vmatpush.bf16.msra.mxu0 %v1583
    %1635 = vmatpush.bf16.msra.mxu0 %v1580
    %1636 = vmatpush.bf16.msra.mxu0 %v1577
    %1637 = vmatpush.bf16.msra.mxu0 %v1574
    %1638 = vmatpush.bf16.msra.mxu0 %v1571
    %1639 = vmatpush.bf16.msra.mxu0 %v1568
    %1640 = vmatpush.bf16.msra.mxu0 %v1565
    %1641 = vmatpush.bf16.msra.mxu0 %v1562
    %1642 = vmatmul.bf16.gmra.mxu0 %v1472
    %v1643 = vpop.f32.mrf.mxu0
    %v1644 = vadd.f32 %v1476, %v1643
    %v1645 = vpop.f32.mrf.mxu0
    %1646 = vdwg.mxu0
    %v1647 = vrot.slane %v1631, 7
    %v1648 = vrot.slane %v1644, 7
    %v1649 = vmul.f32 %v1618, %v1631
    %v1650 = vpack.c.bf16 %v1649, %v1649
    %1651 = vmatpush.bf16.msra.mxu0 %v606
    %1652 = vmatpush.bf16.msra.mxu0 %v605
    %1653 = vmatpush.bf16.msra.mxu0 %v604
    %1654 = vmatpush.bf16.msra.mxu0 %v603
    %1655 = vmatpush.bf16.msra.mxu0 %v602
    %1656 = vmatpush.bf16.msra.mxu0 %v601
    %1657 = vmatpush.bf16.msra.mxu0 %v600
    %1658 = vmatpush.bf16.msra.mxu0 %v599
    %1659 = vmatmul.bf16.gmra.mxu0 %v1650
    %v1660 = vpop.f32.mrf.mxu0
    %v1661 = vadd.f32 0.0, %v1660
    %v1662 = vpop.f32.mrf.mxu0
    %1663 = vdwg.mxu0
    %v1664 = vmul.f32 %v1661, 0.17677669
    %v1665 = vmul.f32 %v1618, %v1647
    %v1666 = vpack.c.bf16 %v1665, %v1665
    %1667 = vmatpush.bf16.msra.mxu0 %v606
    %1668 = vmatpush.bf16.msra.mxu0 %v605
    %1669 = vmatpush.bf16.msra.mxu0 %v604
    %1670 = vmatpush.bf16.msra.mxu0 %v603
    %1671 = vmatpush.bf16.msra.mxu0 %v602
    %1672 = vmatpush.bf16.msra.mxu0 %v601
    %1673 = vmatpush.bf16.msra.mxu0 %v600
    %1674 = vmatpush.bf16.msra.mxu0 %v599
    %1675 = vmatmul.bf16.gmra.mxu0 %v1666
    %v1676 = vpop.f32.mrf.mxu0
    %v1677 = vadd.f32 0.0, %v1676
    %v1678 = vpop.f32.mrf.mxu0
    %1679 = vdwg.mxu0
    %v1680 = vmul.f32 %v1677, 0.17677669
    %v1681 = vmax.f32 %v1664, %v1680
    %v1682 = vsub.f32 %v1664, %v1681
    %v1683 = vmul.f32 %v1682, 1.442695
    %v1684 = vpow.pop %v1683
    %v1685 = vsub.f32 %v1680, %v1681
    %v1686 = vmul.f32 %v1685, 1.442695
    %v1687 = vpow.pop %v1686
    %v1688 = vadd.f32 %v1684, %v1687
    %v1689 = vrcp.pop %v1688
    %v1690 = vmul.f32 %v1684, %v1689
    %v1691 = vsel %vm656, %v1690, 1.0
    %v1692 = vmul.f32 %v1687, %v1689
    %v1693 = vsel %vm656, %v1692, 0.0
    %v1694 = vpack.c.bf16 %v1691, %v1691
    %v1696 = vsel %vm661, %v1694, 0
    %1698 = vmatpush.bf16.msra.mxu0 0
    %1699 = vmatpush.bf16.msra.mxu0 0
    %1700 = vmatpush.bf16.msra.mxu0 0
    %1701 = vmatpush.bf16.msra.mxu0 0
    %1702 = vmatpush.bf16.msra.mxu0 0
    %1703 = vmatpush.bf16.msra.mxu0 0
    %1704 = vmatpush.bf16.msra.mxu0 0
    %1705 = vmatpush.bf16.msra.mxu0 %v667
    %1706 = vmatmul.bf16.gmra.mxu0 %v1696
    %v1707 = vpop.f32.mrf.mxu0
    %v1708 = vadd.f32 0.0, %v1707
    %v1709 = vpop.f32.mrf.mxu0
    %1710 = vdwg.mxu0
    %v1711 = vmul.f32 %v1708, %v1644
    %v1712 = vpack.c.bf16 %v1693, %v1693
    %v1714 = vsel %vm661, %v1712, 0
    %1716 = vmatpush.bf16.msra.mxu0 0
    %1717 = vmatpush.bf16.msra.mxu0 0
    %1718 = vmatpush.bf16.msra.mxu0 0
    %1719 = vmatpush.bf16.msra.mxu0 0
    %1720 = vmatpush.bf16.msra.mxu0 0
    %1721 = vmatpush.bf16.msra.mxu0 0
    %1722 = vmatpush.bf16.msra.mxu0 0
    %1723 = vmatpush.bf16.msra.mxu0 %v667
    %1724 = vmatmul.bf16.gmra.mxu0 %v1714
    %v1725 = vpop.f32.mrf.mxu0
    %v1726 = vadd.f32 0.0, %v1725
    %v1727 = vpop.f32.mrf.mxu0
    %1728 = vdwg.mxu0
    %v1729 = vmul.f32 %v1726, %v1648
    %v1730 = vadd.f32 %v1711, %v1729
    %v1731 = vpack.c.bf16 %v1730, %v1730
    %v1748 = vunpack.c.l.b16 %v1338
    %v1749 = vunpack.c.l.b16 %v1339
    %v1750 = vunpack.c.l.b16 %v1340
    %v1751 = vunpack.c.l.b16 %v1341
    %v1752 = vunpack.c.l.b16 %v1342
    %v1753 = vunpack.c.l.b16 %v1343
    %v1754 = vunpack.c.l.b16 %v1344
    %v1755 = vunpack.c.l.b16 %v1345
    %v1756 = vunpack.c.l.b16 %v1346
    %v1757 = vunpack.c.l.b16 %v1347
    %v1758 = vunpack.c.l.b16 %v1348
    %v1759 = vunpack.c.l.b16 %v1349
    %v1760 = vunpack.c.l.b16 %v1350
    %v1761 = vunpack.c.l.b16 %v1351
    %v1762 = vunpack.c.l.b16 %v1352
    %v1763 = vunpack.c.l.b16 %v1353
    %v1764 = vpack.c.b16 %v1749, %v1748
    %v1765 = vpack.c.b16 %v1751, %v1750
    %v1766 = vpack.c.b16 %v1753, %v1752
    %v1767 = vpack.c.b16 %v1755, %v1754
    %v1768 = vpack.c.b16 %v1757, %v1756
    %v1769 = vpack.c.b16 %v1759, %v1758
    %v1770 = vpack.c.b16 %v1761, %v1760
    %v1771 = vpack.c.b16 %v1763, %v1762
    %1780 = vmatpush.bf16.msra.mxu0 %v1771
    %1781 = vmatpush.bf16.msra.mxu0 %v1770
    %1782 = vmatpush.bf16.msra.mxu0 %v1769
    %1783 = vmatpush.bf16.msra.mxu0 %v1768
    %1784 = vmatpush.bf16.msra.mxu0 %v1767
    %1785 = vmatpush.bf16.msra.mxu0 %v1766
    %1786 = vmatpush.bf16.msra.mxu0 %v1765
    %1787 = vmatpush.bf16.msra.mxu0 %v1764
    %1788 = vmatmul.bf16.gmra.mxu0 %v1731
    %v1789 = vpop.f32.mrf.mxu0
    %v1790 = vadd.f32 0.0, %v1789
    %v1791 = vpop.f32.mrf.mxu0
    %1792 = vdwg.mxu0
    %v1793 = vadd.f32 %v1295, %v1790
    %v1794 = vadd.f32 %v1793, %v1300
    %1795 = vadd.xlane.f32.xlu0 %v1794
    %v1796 = vpop.xlane.xlu0 %1795
    %v1797 = vmul.f32 %v1796, %v367
    %v1798 = vsub.f32 %v1794, %v1797
    %v1799 = vmul.f32 %v1798, %v1798
    %1800 = vadd.xlane.f32.xlu0 %v1799
    %v1801 = vpop.xlane.xlu0 %1800
    %v1802 = vmul.f32 %v1801, %v367
    %v1803 = vadd.f32 %v1802, 1e-05
    %v1804 = vrsqrt.pop %v1803
    %v1805 = vmul.f32 %v1804, %v1803
    %v1806 = vmul.f32 %v1805, %v1804
    %v1807 = vmul.f32 0.5, %v1806
    %v1808 = vsub.f32 1.5, %v1807
    %v1809 = vmul.f32 %v1804, %v1808
    %vm1810 = vweird.f32 %v1803
    %vm1811 = vweird.f32 %v1804
    %vm1812 = vmor %vm1810, %vm1811
    %v1813 = vsel %vm1812, %v1804, %v1809
    %v1814 = vmul.f32 %v1798, %v1813
    %v1815 = vmul.f32 %v1814, %v1301
    %v1816 = vadd.f32 %v1815, %v1302
    %v1817 = vpack.c.bf16 %v1816, %v1816
    %v1819 = vperm.slane %v1304, 0
    %v1820 = vperm.slane %v1304, 1
    %v1821 = vperm.slane %v1304, 2
    %v1822 = vperm.slane %v1304, 3
    %v1859 = vunpack.c.l.b16 %v1354
    %v1860 = vunpack.c.h.b16 %v1354
    %v1861 = vunpack.c.l.b16 %v1355
    %v1862 = vunpack.c.h.b16 %v1355
    %v1863 = vunpack.c.l.b16 %v1356
    %v1864 = vunpack.c.h.b16 %v1356
    %v1865 = vunpack.c.l.b16 %v1357
    %v1866 = vunpack.c.h.b16 %v1357
    %v1867 = vunpack.c.l.b16 %v1358
    %v1868 = vunpack.c.h.b16 %v1358
    %v1869 = vunpack.c.l.b16 %v1359
    %v1870 = vunpack.c.h.b16 %v1359
    %v1871 = vunpack.c.l.b16 %v1360
    %v1872 = vunpack.c.h.b16 %v1360
    %v1873 = vunpack.c.l.b16 %v1361
    %v1874 = vunpack.c.h.b16 %v1361
    %v1875 = vunpack.c.l.b16 %v1362
    %v1876 = vunpack.c.h.b16 %v1362
    %v1877 = vunpack.c.l.b16 %v1363
    %v1878 = vunpack.c.h.b16 %v1363
    %v1879 = vunpack.c.l.b16 %v1364
    %v1880 = vunpack.c.h.b16 %v1364
    %v1881 = vunpack.c.l.b16 %v1365
    %v1882 = vunpack.c.h.b16 %v1365
    %v1883 = vunpack.c.l.b16 %v1366
    %v1884 = vunpack.c.h.b16 %v1366
    %v1885 = vunpack.c.l.b16 %v1367
    %v1886 = vunpack.c.h.b16 %v1367
    %v1887 = vunpack.c.l.b16 %v1368
    %v1888 = vunpack.c.h.b16 %v1368
    %v1889 = vunpack.c.l.b16 %v1369
    %v1890 = vunpack.c.h.b16 %v1369
    %v1891 = vunpack.c.l.b16 %v1370
    %v1892 = vunpack.c.h.b16 %v1370
    %v1893 = vunpack.c.l.b16 %v1371
    %v1894 = vunpack.c.h.b16 %v1371
    %v1895 = vunpack.c.l.b16 %v1372
    %v1896 = vunpack.c.h.b16 %v1372
    %v1897 = vunpack.c.l.b16 %v1373
    %v1898 = vunpack.c.h.b16 %v1373
    %v1899 = vunpack.c.l.b16 %v1374
    %v1900 = vunpack.c.h.b16 %v1374
    %v1901 = vunpack.c.l.b16 %v1375
    %v1902 = vunpack.c.h.b16 %v1375
    %v1903 = vunpack.c.l.b16 %v1376
    %v1904 = vunpack.c.h.b16 %v1376
    %v1905 = vunpack.c.l.b16 %v1377
    %v1906 = vunpack.c.h.b16 %v1377
    %v1907 = vunpack.c.l.b16 %v1378
    %v1908 = vunpack.c.h.b16 %v1378
    %v1909 = vunpack.c.l.b16 %v1379
    %v1910 = vunpack.c.h.b16 %v1379
    %v1911 = vunpack.c.l.b16 %v1380
    %v1912 = vunpack.c.h.b16 %v1380
    %v1913 = vunpack.c.l.b16 %v1381
    %v1914 = vunpack.c.h.b16 %v1381
    %v1915 = vunpack.c.l.b16 %v1382
    %v1916 = vunpack.c.h.b16 %v1382
    %v1917 = vunpack.c.l.b16 %v1383
    %v1918 = vunpack.c.h.b16 %v1383
    %v1919 = vunpack.c.l.b16 %v1384
    %v1920 = vunpack.c.h.b16 %v1384
    %v1921 = vunpack.c.l.b16 %v1385
    %v1922 = vunpack.c.h.b16 %v1385
    %v1923 = vpack.c.b16 %v1863, %v1859
    %v1924 = vpack.c.b16 %v1864, %v1860
    %v1925 = vpack.c.b16 %v1865, %v1861
    %v1926 = vpack.c.b16 %v1866, %v1862
    %v1927 = vpack.c.b16 %v1871, %v1867
    %v1928 = vpack.c.b16 %v1872, %v1868
    %v1929 = vpack.c.b16 %v1873, %v1869
    %v1930 = vpack.c.b16 %v1874, %v1870
    %v1931 = vpack.c.b16 %v1879, %v1875
    %v1932 = vpack.c.b16 %v1880, %v1876
    %v1933 = vpack.c.b16 %v1881, %v1877
    %v1934 = vpack.c.b16 %v1882, %v1878
    %v1935 = vpack.c.b16 %v1887, %v1883
    %v1936 = vpack.c.b16 %v1888, %v1884
    %v1937 = vpack.c.b16 %v1889, %v1885
    %v1938 = vpack.c.b16 %v1890, %v1886
    %v1939 = vpack.c.b16 %v1895, %v1891
    %v1940 = vpack.c.b16 %v1896, %v1892
    %v1941 = vpack.c.b16 %v1897, %v1893
    %v1942 = vpack.c.b16 %v1898, %v1894
    %v1943 = vpack.c.b16 %v1903, %v1899
    %v1944 = vpack.c.b16 %v1904, %v1900
    %v1945 = vpack.c.b16 %v1905, %v1901
    %v1946 = vpack.c.b16 %v1906, %v1902
    %v1947 = vpack.c.b16 %v1911, %v1907
    %v1948 = vpack.c.b16 %v1912, %v1908
    %v1949 = vpack.c.b16 %v1913, %v1909
    %v1950 = vpack.c.b16 %v1914, %v1910
    %v1951 = vpack.c.b16 %v1919, %v1915
    %v1952 = vpack.c.b16 %v1920, %v1916
    %v1953 = vpack.c.b16 %v1921, %v1917
    %v1954 = vpack.c.b16 %v1922, %v1918
    %1987 = vmatpush.bf16.msra.mxu0 %v1951
    %1988 = vmatpush.bf16.msra.mxu0 %v1947
    %1989 = vmatpush.bf16.msra.mxu0 %v1943
    %1990 = vmatpush.bf16.msra.mxu0 %v1939
    %1991 = vmatpush.bf16.msra.mxu0 %v1935
    %1992 = vmatpush.bf16.msra.mxu0 %v1931
    %1993 = vmatpush.bf16.msra.mxu0 %v1927
    %1994 = vmatpush.bf16.msra.mxu0 %v1923
    %1995 = vmatmul.bf16.gmra.mxu0 %v1817
    %v1996 = vpop.f32.mrf.mxu0
    %v1997 = vadd.f32 %v1819, %v1996
    %v1998 = vpop.f32.mrf.mxu0
    %1999 = vdwg.mxu0
    %2000 = vmatpush.bf16.msra.mxu0 %v1952
    %2001 = vmatpush.bf16.msra.mxu0 %v1948
    %2002 = vmatpush.bf16.msra.mxu0 %v1944
    %2003 = vmatpush.bf16.msra.mxu0 %v1940
    %2004 = vmatpush.bf16.msra.mxu0 %v1936
    %2005 = vmatpush.bf16.msra.mxu0 %v1932
    %2006 = vmatpush.bf16.msra.mxu0 %v1928
    %2007 = vmatpush.bf16.msra.mxu0 %v1924
    %2008 = vmatmul.bf16.gmra.mxu0 %v1817
    %v2009 = vpop.f32.mrf.mxu0
    %v2010 = vadd.f32 %v1820, %v2009
    %v2011 = vpop.f32.mrf.mxu0
    %2012 = vdwg.mxu0
    %2013 = vmatpush.bf16.msra.mxu0 %v1953
    %2014 = vmatpush.bf16.msra.mxu0 %v1949
    %2015 = vmatpush.bf16.msra.mxu0 %v1945
    %2016 = vmatpush.bf16.msra.mxu0 %v1941
    %2017 = vmatpush.bf16.msra.mxu0 %v1937
    %2018 = vmatpush.bf16.msra.mxu0 %v1933
    %2019 = vmatpush.bf16.msra.mxu0 %v1929
    %2020 = vmatpush.bf16.msra.mxu0 %v1925
    %2021 = vmatmul.bf16.gmra.mxu0 %v1817
    %v2022 = vpop.f32.mrf.mxu0
    %v2023 = vadd.f32 %v1821, %v2022
    %v2024 = vpop.f32.mrf.mxu0
    %2025 = vdwg.mxu0
    %2026 = vmatpush.bf16.msra.mxu0 %v1954
    %2027 = vmatpush.bf16.msra.mxu0 %v1950
    %2028 = vmatpush.bf16.msra.mxu0 %v1946
    %2029 = vmatpush.bf16.msra.mxu0 %v1942
    %2030 = vmatpush.bf16.msra.mxu0 %v1938
    %2031 = vmatpush.bf16.msra.mxu0 %v1934
    %2032 = vmatpush.bf16.msra.mxu0 %v1930
    %2033 = vmatpush.bf16.msra.mxu0 %v1926
    %2034 = vmatmul.bf16.gmra.mxu0 %v1817
    %v2035 = vpop.f32.mrf.mxu0
    %v2036 = vadd.f32 %v1822, %v2035
    %v2037 = vpop.f32.mrf.mxu0
    %2038 = vdwg.mxu0
    %v2039 = vmul.f32 %v1997, 0.5
    %v2040 = vmul.f32 %v2010, 0.5
    %v2041 = vmul.f32 %v2023, 0.5
    %v2042 = vmul.f32 %v2036, 0.5
    %v2043 = vmul.f32 %v1997, 0.044715
    %v2044 = vmul.f32 %v2010, 0.044715
    %v2045 = vmul.f32 %v2023, 0.044715
    %v2046 = vmul.f32 %v2036, 0.044715
    %v2047 = vmul.f32 %v2043, %v1997
    %v2048 = vmul.f32 %v2044, %v2010
    %v2049 = vmul.f32 %v2045, %v2023
    %v2050 = vmul.f32 %v2046, %v2036
    %v2051 = vmul.f32 %v2047, %v1997
    %v2052 = vmul.f32 %v2048, %v2010
    %v2053 = vmul.f32 %v2049, %v2023
    %v2054 = vmul.f32 %v2050, %v2036
    %v2055 = vadd.f32 %v1997, %v2051
    %v2056 = vadd.f32 %v2010, %v2052
    %v2057 = vadd.f32 %v2023, %v2053
    %v2058 = vadd.f32 %v2036, %v2054
    %v2059 = vmul.f32 %v2055, 0.7978846
    %v2060 = vmul.f32 %v2056, 0.7978846
    %v2061 = vmul.f32 %v2057, 0.7978846
    %v2062 = vmul.f32 %v2058, 0.7978846
    %v2063 = vtanh.pop %v2059
    %v2064 = vtanh.pop %v2060
    %v2065 = vtanh.pop %v2061
    %v2066 = vtanh.pop %v2062
    %v2067 = vadd.f32 %v2063, 1.0
    %v2068 = vadd.f32 %v2064, 1.0
    %v2069 = vadd.f32 %v2065, 1.0
    %v2070 = vadd.f32 %v2066, 1.0
    %v2071 = vmul.f32 %v2039, %v2067
    %v2072 = vmul.f32 %v2040, %v2068
    %v2073 = vmul.f32 %v2041, %v2069
    %v2074 = vmul.f32 %v2042, %v2070
    %v2075 = vpack.c.bf16 %v2071, %v2071
    %v2076 = vpack.c.bf16 %v2072, %v2072
    %v2077 = vpack.c.bf16 %v2073, %v2073
    %v2078 = vpack.c.bf16 %v2074, %v2074
    %v2143 = vunpack.c.l.b16 %v1386
    %v2144 = vunpack.c.l.b16 %v1387
    %v2145 = vunpack.c.l.b16 %v1388
    %v2146 = vunpack.c.l.b16 %v1389
    %v2147 = vunpack.c.l.b16 %v1390
    %v2148 = vunpack.c.l.b16 %v1391
    %v2149 = vunpack.c.l.b16 %v1392
    %v2150 = vunpack.c.l.b16 %v1393
    %v2151 = vunpack.c.l.b16 %v1394
    %v2152 = vunpack.c.l.b16 %v1395
    %v2153 = vunpack.c.l.b16 %v1396
    %v2154 = vunpack.c.l.b16 %v1397
    %v2155 = vunpack.c.l.b16 %v1398
    %v2156 = vunpack.c.l.b16 %v1399
    %v2157 = vunpack.c.l.b16 %v1400
    %v2158 = vunpack.c.l.b16 %v1401
    %v2159 = vunpack.c.l.b16 %v1402
    %v2160 = vunpack.c.l.b16 %v1403
    %v2161 = vunpack.c.l.b16 %v1404
    %v2162 = vunpack.c.l.b16 %v1405
    %v2163 = vunpack.c.l.b16 %v1406
    %v2164 = vunpack.c.l.b16 %v1407
    %v2165 = vunpack.c.l.b16 %v1408
    %v2166 = vunpack.c.l.b16 %v1409
    %v2167 = vunpack.c.l.b16 %v1410
    %v2168 = vunpack.c.l.b16 %v1411
    %v2169 = vunpack.c.l.b16 %v1412
    %v2170 = vunpack.c.l.b16 %v1413
    %v2171 = vunpack.c.l.b16 %v1414
    %v2172 = vunpack.c.l.b16 %v1415
    %v2173 = vunpack.c.l.b16 %v1416
    %v2174 = vunpack.c.l.b16 %v1417
    %v2175 = vunpack.c.l.b16 %v1418
    %v2176 = vunpack.c.l.b16 %v1419
    %v2177 = vunpack.c.l.b16 %v1420
    %v2178 = vunpack.c.l.b16 %v1421
    %v2179 = vunpack.c.l.b16 %v1422
    %v2180 = vunpack.c.l.b16 %v1423
    %v2181 = vunpack.c.l.b16 %v1424
    %v2182 = vunpack.c.l.b16 %v1425
    %v2183 = vunpack.c.l.b16 %v1426
    %v2184 = vunpack.c.l.b16 %v1427
    %v2185 = vunpack.c.l.b16 %v1428
    %v2186 = vunpack.c.l.b16 %v1429
    %v2187 = vunpack.c.l.b16 %v1430
    %v2188 = vunpack.c.l.b16 %v1431
    %v2189 = vunpack.c.l.b16 %v1432
    %v2190 = vunpack.c.l.b16 %v1433
    %v2191 = vunpack.c.l.b16 %v1434
    %v2192 = vunpack.c.l.b16 %v1435
    %v2193 = vunpack.c.l.b16 %v1436
    %v2194 = vunpack.c.l.b16 %v1437
    %v2195 = vunpack.c.l.b16 %v1438
    %v2196 = vunpack.c.l.b16 %v1439
    %v2197 = vunpack.c.l.b16 %v1440
    %v2198 = vunpack.c.l.b16 %v1441
    %v2199 = vunpack.c.l.b16 %v1442
    %v2200 = vunpack.c.l.b16 %v1443
    %v2201 = vunpack.c.l.b16 %v1444
    %v2202 = vunpack.c.l.b16 %v1445
    %v2203 = vunpack.c.l.b16 %v1446
    %v2204 = vunpack.c.l.b16 %v1447
    %v2205 = vunpack.c.l.b16 %v1448
    %v2206 = vunpack.c.l.b16 %v1449
    %v2207 = vpack.c.b16 %v2144, %v2143
    %v2208 = vpack.c.b16 %v2146, %v2145
    %v2209 = vpack.c.b16 %v2148, %v2147
    %v2210 = vpack.c.b16 %v2150, %v2149
    %v2211 = vpack.c.b16 %v2152, %v2151
    %v2212 = vpack.c.b16 %v2154, %v2153
    %v2213 = vpack.c.b16 %v2156, %v2155
    %v2214 = vpack.c.b16 %v2158, %v2157
    %v2215 = vpack.c.b16 %v2160, %v2159
    %v2216 = vpack.c.b16 %v2162, %v2161
    %v2217 = vpack.c.b16 %v2164, %v2163
    %v2218 = vpack.c.b16 %v2166, %v2165
    %v2219 = vpack.c.b16 %v2168, %v2167
    %v2220 = vpack.c.b16 %v2170, %v2169
    %v2221 = vpack.c.b16 %v2172, %v2171
    %v2222 = vpack.c.b16 %v2174, %v2173
    %v2223 = vpack.c.b16 %v2176, %v2175
    %v2224 = vpack.c.b16 %v2178, %v2177
    %v2225 = vpack.c.b16 %v2180, %v2179
    %v2226 = vpack.c.b16 %v2182, %v2181
    %v2227 = vpack.c.b16 %v2184, %v2183
    %v2228 = vpack.c.b16 %v2186, %v2185
    %v2229 = vpack.c.b16 %v2188, %v2187
    %v2230 = vpack.c.b16 %v2190, %v2189
    %v2231 = vpack.c.b16 %v2192, %v2191
    %v2232 = vpack.c.b16 %v2194, %v2193
    %v2233 = vpack.c.b16 %v2196, %v2195
    %v2234 = vpack.c.b16 %v2198, %v2197
    %v2235 = vpack.c.b16 %v2200, %v2199
    %v2236 = vpack.c.b16 %v2202, %v2201
    %v2237 = vpack.c.b16 %v2204, %v2203
    %v2238 = vpack.c.b16 %v2206, %v2205
    %2271 = vmatpush.bf16.msra.mxu0 %v2214
    %2272 = vmatpush.bf16.msra.mxu0 %v2213
    %2273 = vmatpush.bf16.msra.mxu0 %v2212
    %2274 = vmatpush.bf16.msra.mxu0 %v2211
    %2275 = vmatpush.bf16.msra.mxu0 %v2210
    %2276 = vmatpush.bf16.msra.mxu0 %v2209
    %2277 = vmatpush.bf16.msra.mxu0 %v2208
    %2278 = vmatpush.bf16.msra.mxu0 %v2207
    %2279 = vmatmul.bf16.gmra.mxu0 %v2075
    %v2280 = vpop.f32.mrf.mxu0
    %v2281 = vadd.f32 0.0, %v2280
    %v2282 = vpop.f32.mrf.mxu0
    %2283 = vdwg.mxu0
    %2284 = vmatpush.bf16.msra.mxu0 %v2222
    %2285 = vmatpush.bf16.msra.mxu0 %v2221
    %2286 = vmatpush.bf16.msra.mxu0 %v2220
    %2287 = vmatpush.bf16.msra.mxu0 %v2219
    %2288 = vmatpush.bf16.msra.mxu0 %v2218
    %2289 = vmatpush.bf16.msra.mxu0 %v2217
    %2290 = vmatpush.bf16.msra.mxu0 %v2216
    %2291 = vmatpush.bf16.msra.mxu0 %v2215
    %2292 = vmatmul.bf16.gmra.mxu0 %v2076
    %v2293 = vpop.f32.mrf.mxu0
    %v2294 = vadd.f32 %v2281, %v2293
    %v2295 = vpop.f32.mrf.mxu0
    %2296 = vdwg.mxu0
    %2297 = vmatpush.bf16.msra.mxu0 %v2230
    %2298 = vmatpush.bf16.msra.mxu0 %v2229
    %2299 = vmatpush.bf16.msra.mxu0 %v2228
    %2300 = vmatpush.bf16.msra.mxu0 %v2227
    %2301 = vmatpush.bf16.msra.mxu0 %v2226
    %2302 = vmatpush.bf16.msra.mxu0 %v2225
    %2303 = vmatpush.bf16.msra.mxu0 %v2224
    %2304 = vmatpush.bf16.msra.mxu0 %v2223
    %2305 = vmatmul.bf16.gmra.mxu0 %v2077
    %v2306 = vpop.f32.mrf.mxu0
    %v2307 = vadd.f32 %v2294, %v2306
    %v2308 = vpop.f32.mrf.mxu0
    %2309 = vdwg.mxu0
    %2310 = vmatpush.bf16.msra.mxu0 %v2238
    %2311 = vmatpush.bf16.msra.mxu0 %v2237
    %2312 = vmatpush.bf16.msra.mxu0 %v2236
    %2313 = vmatpush.bf16.msra.mxu0 %v2235
    %2314 = vmatpush.bf16.msra.mxu0 %v2234
    %2315 = vmatpush.bf16.msra.mxu0 %v2233
    %2316 = vmatpush.bf16.msra.mxu0 %v2232
    %2317 = vmatpush.bf16.msra.mxu0 %v2231
    %2318 = vmatmul.bf16.gmra.mxu0 %v2078
    %v2319 = vpop.f32.mrf.mxu0
    %v2320 = vadd.f32 %v2307, %v2319
    %v2321 = vpop.f32.mrf.mxu0
    %2322 = vdwg.mxu0
    %v2323 = vadd.f32 %v1794, %v2320
    %v2324 = vadd.f32 %v2323, %v1305
    %v2325 = vld [vmem:[#allocation2 + $0x40] ss:$0 sm:$0xff]
    %v2326 = vld [vmem:[#allocation2 + $0x41] ss:$0 sm:$0xff]
    %2327 = vadd.xlane.f32.xlu0 %v2324
    %v2328 = vpop.xlane.xlu0 %2327
    %v2329 = vmul.f32 %v2328, %v367
    %v2330 = vsub.f32 %v2324, %v2329
    %v2331 = vmul.f32 %v2330, %v2330
    %2332 = vadd.xlane.f32.xlu0 %v2331
    %v2333 = vpop.xlane.xlu0 %2332
    %v2334 = vmul.f32 %v2333, %v367
    %v2335 = vadd.f32 %v2334, 1e-05
    %v2336 = vrsqrt.pop %v2335
    %v2337 = vmul.f32 %v2336, %v2335
    %v2338 = vmul.f32 %v2337, %v2336
    %v2339 = vmul.f32 0.5, %v2338
    %v2340 = vsub.f32 1.5, %v2339
    %v2341 = vmul.f32 %v2336, %v2340
    %vm2342 = vweird.f32 %v2335
    %vm2343 = vweird.f32 %v2336
    %vm2344 = vmor %vm2342, %vm2343
    %v2345 = vsel %vm2344, %v2336, %v2341
    %v2346 = vmul.f32 %v2330, %v2345
    %v2347 = vmul.f32 %v2346, %v2325
    %v2348 = vadd.f32 %v2347, %v2326
    %v2349 = vpack.c.bf16 %v2348, %v2348
    %v2366 = vunpack.c.l.b16 %v85
    %v2367 = vunpack.c.l.b16 %v86
    %v2368 = vunpack.c.l.b16 %v87
    %v2369 = vunpack.c.l.b16 %v88
    %v2370 = vunpack.c.l.b16 %v89
    %v2371 = vunpack.c.l.b16 %v90
    %v2372 = vunpack.c.l.b16 %v91
    %v2373 = vunpack.c.l.b16 %v92
    %v2374 = vunpack.c.l.b16 %v93
    %v2375 = vunpack.c.l.b16 %v94
    %v2376 = vunpack.c.l.b16 %v95
    %v2377 = vunpack.c.l.b16 %v96
    %v2378 = vunpack.c.l.b16 %v97
    %v2379 = vunpack.c.l.b16 %v98
    %v2380 = vunpack.c.l.b16 %v99
    %v2381 = vunpack.c.l.b16 %v100
    %v2382 = vpack.c.b16 %v2367, %v2366
    %v2383 = vpack.c.b16 %v2369, %v2368
    %v2384 = vpack.c.b16 %v2371, %v2370
    %v2385 = vpack.c.b16 %v2373, %v2372
    %v2386 = vpack.c.b16 %v2375, %v2374
    %v2387 = vpack.c.b16 %v2377, %v2376
    %v2388 = vpack.c.b16 %v2379, %v2378
    %v2389 = vpack.c.b16 %v2381, %v2380
    %2398 = vmatpush.bf16.msra.mxu0 %v2389
    %2399 = vmatpush.bf16.msra.mxu0 %v2388
    %2400 = vmatpush.bf16.msra.mxu0 %v2387
    %2401 = vmatpush.bf16.msra.mxu0 %v2386
    %2402 = vmatpush.bf16.msra.mxu0 %v2385
    %2403 = vmatpush.bf16.msra.mxu0 %v2384
    %2404 = vmatpush.bf16.msra.mxu0 %v2383
    %2405 = vmatpush.bf16.msra.mxu0 %v2382
    %2406 = vmatmul.bf16.gmra.mxu0 %v2349
    %v2407 = vpop.f32.mrf.mxu0
    %v2408 = vadd.f32 0.0, %v2407
    %v2409 = vpop.f32.mrf.mxu0
    %2410 = vdwg.mxu0
    %2411 = vst [vmem:[#allocation8] sm:$0xff] %v2408
    // Predicated region
    $region34: #{tpu_custom_call.1} parent=1 // pred_check
      _
    $region35: #{tpu_custom_call.1} parent=1 // pred_check_branch
      %2413 = sbr.rel (0) target = $region37
    $region36: #{tpu_custom_call.1} parent=1 // pred_region
      %2415 = vsyncadd [#allocation4], 0
      %s2417 = sshll.u32 [#allocation8], 4
      %s2418 = int_to_ptr.vmem [resolvable:$true] %s2417
      %s2419 = sshll.u32 %s5, 4
      %s2420 = int_to_ptr.hbm [resolvable:$true] %s2419
      %2422 = dma.vmem_to_hbm [thread:$0]  %s2418, 128, %s2420, [#allocation4]
    $region37: #{tpu_custom_call.1} parent=1 // pred_fallthru
      _
    // Predicated region
    $region38: #{tpu_custom_call.1} parent=1 // pred_check
      _
    $region39: #{tpu_custom_call.1} parent=1 // pred_check_branch
      %2424 = sbr.rel (0) target = $region41
    $region40: #{tpu_custom_call.1} parent=1 // pred_region
      %2426 = dma.done [#allocation4], 128
    $region41: #{tpu_custom_call.1} parent=1 // pred_fallthru
      _
    %2427 = vsyncpa [#allocation3], 1
    %2428 = vsyncpa [#allocation6], 1
    %2429 = vsyncpa [#allocation4], 1

</llo_original>
